<compile_context>
chip_gen: v5e
topology: v5e:2x2
jax: 0.10.0
libtpu: 0.0.40
codegen_flags: <defaults>
</compile_context>

<pallas_src>
import math
import jax
import jax.numpy as jnp
from jax import lax
from jax.experimental import pallas as pl
from jax.experimental.pallas import tpu as pltpu


def _round_up(x, m):
    return (x + m - 1) // m * m


# ---------------------------------------------------------------------------
# Kernel factory: all LSTM layers, whole sequence, single grid step.
# Ref order (positional):
#   gates0_ref : (T*Bp, 4H)            precomputed layer-0 input projection (+ bias)
#   [L > 1] wih_ref   : (L-1, H, 4H)   W_ih^T for layers 1..L-1
#   [L > 1] brest_ref : (L-1, 1, 4H)   fused biases for layers 1..L-1
#   whh_ref    : (L, H, 4H)            W_hh^T for all layers
#   hidden_ref : (L, Bp, H)            final hidden per layer (output)
#   cell_ref   : (L, Bp, H)            final cell per layer   (output)
#   [L > 1] gates_scr : (T*Bp, 4H)     per-layer input gates (layers >= 1)
#   [L > 1] act_scr   : (T*Bp, H)      layer output sequence (layers < L-1 producers)
#   h_scr, c_scr : (Bp, H)             recurrent carries
# Gate column order inside the kernel is [i, f, o, g] (reordered at wrapper time).
# ---------------------------------------------------------------------------
def _make_encoder_kernel(L, T, Bp, H, unroll=8):
    G = 4 * H

    def kernel(*refs):
        it = iter(refs)
        gates0_ref = next(it)
        if L > 1:
            wih_ref = next(it)
            brest_ref = next(it)
        whh_ref = next(it)
        hidden_ref = next(it)
        cell_ref = next(it)
        if L > 1:
            gates_scr = next(it)
            act_scr = next(it)
        h_scr = next(it)
        c_scr = next(it)

        def run_layer(layer_idx, gates_ref, store_acts):
            whh_t = whh_ref[layer_idx]                      # (H, 4H)
            h_scr[...] = jnp.zeros_like(h_scr)
            c_scr[...] = jnp.zeros_like(c_scr)

            def step_fn(row):
                g_in = gates_ref[pl.ds(row, Bp), :]         # (Bp, 4H) precomputed gates
                gates = g_in + jnp.dot(h_scr[...], whh_t,
                                       preferred_element_type=jnp.float32)
                # Reordered gate layout [i, f, o, g]: one wide sigmoid + one tanh.
                sig = jax.nn.sigmoid(gates[:, 0:3 * H])
                i_g = sig[:, 0:H]
                f_g = sig[:, H:2 * H]
                o_g = sig[:, 2 * H:3 * H]
                g_g = jnp.tanh(gates[:, 3 * H:4 * H])
                c_new = f_g * c_scr[...] + i_g * g_g
                h_new = o_g * jnp.tanh(c_new)
                h_scr[...] = h_new
                c_scr[...] = c_new
                if store_acts:                              # trace-time guard
                    act_scr[pl.ds(row, Bp), :] = h_new

            if T <= 16:
                # Short sequences: fully unroll (straight-line code for the scheduler).
                for t in range(T):
                    step_fn(t * Bp)
            else:
                # Long sequences: partial unroll (U steps per visible loop iteration).
                U = unroll
                n_chunks = T // U

                def body(i, carry):
                    base = pl.multiple_of(i * (U * Bp), Bp)
                    for u in range(U):
                        step_fn(base + u * Bp)
                    return carry

                lax.fori_loop(0, n_chunks, body, 0)
                for t in range(n_chunks * U, T):            # remainder, unrolled
                    step_fn(t * Bp)

            hidden_ref[layer_idx] = h_scr[...].astype(hidden_ref.dtype)
            cell_ref[layer_idx] = c_scr[...].astype(cell_ref.dtype)

        # Layer 0 reads directly from the pipelined input buffer (no VMEM->VMEM copy);
        # its sequence output is only stored if a later layer consumes it.
        run_layer(0, gates0_ref, store_acts=(L > 1))

        # Layers 1..L-1: batched input projection over the FULL previous-layer sequence
        # (one (T*Bp, H) x (H, 4H) MXU matmul), then the recurrence.
        for l in range(1, L):
            gates_scr[...] = (jnp.dot(act_scr[...], wih_ref[l - 1],
                                      preferred_element_type=jnp.float32)
                              + brest_ref[l - 1])
            run_layer(l, gates_scr, store_acts=(l < L - 1))

    return kernel


# ---------------------------------------------------------------------------
# Wrapper: embedding -> dropout (identity in eval) -> stacked LSTM (Pallas)
# ---------------------------------------------------------------------------
def encoder_forward_pallas(tokens, emb_table, lstm_params):
    """tokens: (T, B) int32. Returns (hidden, cell) each (num_layers, B, H)."""
    T, B = tokens.shape
    E = emb_table.shape[1]
    L = len(lstm_params)
    H = lstm_params[0][1].shape[1]
    G = 4 * H
    Bp = _round_up(max(B, 1), 8)      # pad batch to a full sublane group

    def reorder(w):
        # PyTorch gate order [i, f, g, o] -> kernel order [i, f, o, g] along axis 0 (4H).
        return jnp.concatenate([w[0:H], w[H:2 * H], w[3 * H:4 * H], w[2 * H:3 * H]],
                               axis=0)

    # Embedding lookup (gather) — plain-JAX glue.
    # TODO(synk): dropout implemented as identity (eval-mode); stateful PRNG dropout omitted.
    x = emb_table[tokens].astype(jnp.float32)                     # (T, B, E)
    if Bp != B:
        x = jnp.pad(x, ((0, 0), (0, Bp - B), (0, 0)))
    x2 = x.reshape(T * Bp, E)

    # Hoisted layer-0 input projection: one big (T*Bp, E) x (E, 4H) matmul + fused bias.
    w_ih0, _, b_ih0, b_hh0 = lstm_params[0]
    gates0 = (x2 @ jnp.transpose(reorder(w_ih0)).astype(jnp.float32)
              + reorder(b_ih0 + b_hh0).reshape(1, G).astype(jnp.float32))  # (T*Bp, 4H)

    whh = jnp.stack([jnp.transpose(reorder(p[1])).astype(jnp.float32)
                     for p in lstm_params], axis=0)               # (L, H, 4H)

    operands = [gates0]
    in_specs = [pl.BlockSpec((T * Bp, G), lambda i: (0, 0))]      # layer-0 gates
    if L > 1:
        wih_rest = jnp.stack([jnp.transpose(reorder(lstm_params[l][0])).astype(jnp.float32)
                              for l in range(1, L)], axis=0)      # (L-1, H, 4H)
        b_rest = jnp.stack([reorder(lstm_params[l][2] + lstm_params[l][3])
                            .reshape(1, G).astype(jnp.float32)
                            for l in range(1, L)], axis=0)        # (L-1, 1, 4H)
        operands += [wih_rest, b_rest]
        in_specs += [pl.BlockSpec((L - 1, H, G), lambda i: (0, 0, 0)),
                     pl.BlockSpec((L - 1, 1, G), lambda i: (0, 0, 0))]
    operands += [whh]
    in_specs += [pl.BlockSpec((L, H, G), lambda i: (0, 0, 0))]

    scratch_shapes = []
    if L > 1:
        scratch_shapes += [pltpu.VMEM((T * Bp, G), jnp.float32),  # per-layer input gates
                           pltpu.VMEM((T * Bp, H), jnp.float32)]  # layer activations (seq)
    scratch_shapes += [pltpu.VMEM((Bp, H), jnp.float32),          # h carry
                       pltpu.VMEM((Bp, H), jnp.float32)]          # c carry

    out_shapes = (
        jax.ShapeDtypeStruct((L, Bp, H), jnp.float32),            # hidden
        jax.ShapeDtypeStruct((L, Bp, H), jnp.float32),            # cell
    )

    # VMEM budget: (double-buffered) inputs + outputs + scratch, with headroom.
    def nbytes(shape):
        return math.prod(shape) * 4
    input_bytes = nbytes((T * Bp, G)) + nbytes((L, H, G))
    if L > 1:
        input_bytes += nbytes((L - 1, H, G)) + nbytes((L - 1, 1, G))
    output_bytes = 2 * nbytes((L, Bp, H))
    scratch_bytes = 2 * nbytes((Bp, H))
    if L > 1:
        scratch_bytes += nbytes((T * Bp, G)) + nbytes((T * Bp, H))
    vmem_limit = 2 * (input_bytes + output_bytes) + scratch_bytes + (4 << 20)
    vmem_limit = int(min(max(vmem_limit, 32 << 20), 100 << 20))

    cost = pl.CostEstimate(
        flops=int(2 * L * T * Bp * H * G            # per-step h @ W_hh^T
                  + 2 * max(L - 1, 0) * T * Bp * H * G   # in-kernel input projections
                  + 10 * L * T * Bp * H),           # elementwise gate math
        transcendentals=int(5 * L * T * Bp * H),
        bytes_accessed=int(input_bytes + output_bytes),
    )

    kernel = _make_encoder_kernel(L, T, Bp, H)

    hidden_p, cell_p = pl.pallas_call(
        kernel,
        out_shape=out_shapes,
        grid_spec=pltpu.PrefetchScalarGridSpec(
            num_scalar_prefetch=0,
            grid=(1,),                                            # whole recurrence in one step
            in_specs=in_specs,
            out_specs=[pl.BlockSpec((L, Bp, H), lambda i: (0, 0, 0)),
                       pl.BlockSpec((L, Bp, H), lambda i: (0, 0, 0))],
            scratch_shapes=scratch_shapes,
        ),
        compiler_params=pltpu.CompilerParams(
            dimension_semantics=("arbitrary",),
            vmem_limit_bytes=vmem_limit),
        cost_estimate=cost,
    )(*operands)

    return hidden_p[:, :B, :], cell_p[:, :B, :]


# ---------------------------------------------------------------------------
# Parameter init (PyTorch-like) and pure-JAX reference for a correctness check.
# ---------------------------------------------------------------------------
def init_encoder_params(key, input_size, embedding_size, hidden_size, num_layers):
    keys = jax.random.split(key, 1 + 4 * num_layers)
    emb = jax.random.normal(keys[0], (input_size, embedding_size), jnp.float32)

    params = []
    bound = 1.0 / math.sqrt(hidden_size)
    for layer in range(num_layers):
        in_dim = embedding_size if layer == 0 else hidden_size
        k0, k1, k2, k3 = keys[1 + 4 * layer: 1 + 4 * (layer + 1)]
        w_ih = jax.random.uniform(k0, (4 * hidden_size, in_dim), jnp.float32, -bound, bound)
        w_hh = jax.random.uniform(k1, (4 * hidden_size, hidden_size), jnp.float32, -bound, bound)
        b_ih = jax.random.uniform(k2, (4 * hidden_size,), jnp.float32, -bound, bound)
        b_hh = jax.random.uniform(k3, (4 * hidden_size,), jnp.float32, -bound, bound)
        params.append((w_ih, w_hh, b_ih, b_hh))
    return emb, params


def encoder_reference(tokens, emb_table, lstm_params):
    x = emb_table[tokens]
    T, B, _ = x.shape
    hiddens, cells = [], []
    for (w_ih, w_hh, b_ih, b_hh) in lstm_params:
        H = w_hh.shape[1]
        h = jnp.zeros((B, H), jnp.float32)
        c = jnp.zeros((B, H), jnp.float32)
        outs = []
        for t in range(T):
            gates = x[t] @ w_ih.T + h @ w_hh.T + b_ih + b_hh
            i_g = jax.nn.sigmoid(gates[:, 0 * H:1 * H])
            f_g = jax.nn.sigmoid(gates[:, 1 * H:2 * H])
            g_g = jnp.tanh(gates[:, 2 * H:3 * H])
            o_g = jax.nn.sigmoid(gates[:, 3 * H:4 * H])
            c = f_g * c + i_g * g_g
            h = o_g * jnp.tanh(c)
            outs.append(h)
        x = jnp.stack(outs, axis=0)
        hiddens.append(h)
        cells.append(c)
    return jnp.stack(hiddens, axis=0), jnp.stack(cells, axis=0)


if __name__ == "__main__":
    # Small, deterministic example shapes.
    input_size = 50        # vocab
    embedding_size = 32
    hidden_size = 32
    num_layers = 2
    seq_len = 8
    batch = 2

    key = jax.random.PRNGKey(0)
    k_params, k_tokens = jax.random.split(key)

    emb_table, lstm_params = init_encoder_params(
        k_params, input_size, embedding_size, hidden_size, num_layers)

    tokens = jax.random.randint(k_tokens, (seq_len, batch), 0, input_size, jnp.int32)

    fwd = jax.jit(encoder_forward_pallas)
    hidden, cell = fwd(tokens, emb_table, lstm_params)
    hidden, cell = jax.block_until_ready((hidden, cell))

    # Sanity check against a pure-JAX reference.
    h_ref, c_ref = encoder_reference(tokens, emb_table, lstm_params)
    assert hidden.shape == (num_layers, batch, hidden_size)
    assert cell.shape == (num_layers, batch, hidden_size)
    assert jnp.allclose(hidden, h_ref, atol=1e-4, rtol=1e-4)
    assert jnp.allclose(cell, c_ref, atol=1e-4, rtol=1e-4)

    print("KERNEL_OK")
</pallas_src>

<mosaic_0001>
module attributes {stable_mosaic.version = 11 : i64} {
  func.func @kernel(%arg0: i32, %arg1: memref<64x128xf32, #tpu.memory_space<vmem>>, %arg2: memref<1x32x128xf32, #tpu.memory_space<vmem>>, %arg3: memref<1x1x128xf32, #tpu.memory_space<vmem>>, %arg4: memref<2x32x128xf32, #tpu.memory_space<vmem>>, %arg5: memref<2x8x32xf32, #tpu.memory_space<vmem>>, %arg6: memref<2x8x32xf32, #tpu.memory_space<vmem>>, %arg7: memref<64x128xf32, #tpu.memory_space<vmem>>, %arg8: memref<64x32xf32, #tpu.memory_space<vmem>>, %arg9: memref<8x32xf32, #tpu.memory_space<vmem>>, %arg10: memref<8x32xf32, #tpu.memory_space<vmem>>) attributes {dimension_semantics = [#tpu.dimension_semantics<arbitrary>], iteration_bounds = array<i64: 1>, scalar_prefetch = 0 : i64, scratch_operands = 4 : i64, tpu.core_type = #tpu.core_type<tc>, window_params = [{pipeline_mode = #tpu.pipeline_mode<synchronous>, transform_indices = @transform_0, window_bounds = array<i64: 64, 128>}, {pipeline_mode = #tpu.pipeline_mode<synchronous>, transform_indices = @transform_1, window_bounds = array<i64: 1, 32, 128>}, {pipeline_mode = #tpu.pipeline_mode<synchronous>, transform_indices = @transform_2, window_bounds = array<i64: 1, 1, 128>}, {pipeline_mode = #tpu.pipeline_mode<synchronous>, transform_indices = @transform_3, window_bounds = array<i64: 2, 32, 128>}, {pipeline_mode = #tpu.pipeline_mode<synchronous>, transform_indices = @transform_4, window_bounds = array<i64: 2, 8, 32>}, {pipeline_mode = #tpu.pipeline_mode<synchronous>, transform_indices = @transform_5, window_bounds = array<i64: 2, 8, 32>}]} {
    %c0 = arith.constant 0 : index
    %c0_0 = arith.constant 0 : index
    %c0_1 = arith.constant 0 : index
    %0 = vector.load %arg4[%c0, %c0_0, %c0_1] : memref<2x32x128xf32, #tpu.memory_space<vmem>>, vector<1x32x128xf32>
    %1 = vector.shape_cast %0 : vector<1x32x128xf32> to vector<32x128xf32>
    %cst = arith.constant 0.000000e+00 : f32
    %2 = vector.broadcast %cst : f32 to vector<8x32xf32>
    %c0_2 = arith.constant 0 : index
    %c0_3 = arith.constant 0 : index
    %3 = vector.load %arg9[%c0_2, %c0_3] : memref<8x32xf32, #tpu.memory_space<vmem>>, vector<8x32xf32>
    tpu.vector_store %arg9[%c0_2, %c0_3], %2 {strides = array<i32>} : memref<8x32xf32, #tpu.memory_space<vmem>>, vector<8x32xf32>,
    %cst_4 = arith.constant 0.000000e+00 : f32
    %4 = vector.broadcast %cst_4 : f32 to vector<8x32xf32>
    %c0_5 = arith.constant 0 : index
    %c0_6 = arith.constant 0 : index
    %5 = vector.load %arg10[%c0_5, %c0_6] : memref<8x32xf32, #tpu.memory_space<vmem>>, vector<8x32xf32>
    tpu.vector_store %arg10[%c0_5, %c0_6], %4 {strides = array<i32>} : memref<8x32xf32, #tpu.memory_space<vmem>>, vector<8x32xf32>,
    %c0_7 = arith.constant 0 : index
    %c0_8 = arith.constant 0 : index
    %6 = vector.load %arg1[%c0_7, %c0_8] : memref<64x128xf32, #tpu.memory_space<vmem>>, vector<8x128xf32>
    %c0_9 = arith.constant 0 : index
    %c0_10 = arith.constant 0 : index
    %7 = vector.load %arg9[%c0_9, %c0_10] : memref<8x32xf32, #tpu.memory_space<vmem>>, vector<8x32xf32>
    %cst_11 = arith.constant dense<0.000000e+00> : vector<8x128xf32>
    %8 = tpu.matmul %7, %1, %cst_11 {dimension_numbers = #tpu.dot_dimension_numbers<[1], [0], [0], [1], [0, 0, 1, 1], [], []>} : vector<8x32xf32>, vector<32x128xf32>, vector<8x128xf32> -> vector<8x128xf32>
    %9 = arith.addf %6, %8 : vector<8x128xf32>
    %10 = vector.extract_strided_slice %9 {offsets = [0, 0], sizes = [8, 96], strides = [1, 1]} : vector<8x128xf32> to vector<8x96xf32>
    %11 = arith.negf %10 : vector<8x96xf32>
    %12 = math.exp %11 : vector<8x96xf32>
    %cst_12 = arith.constant 1.000000e+00 : f32
    %13 = vector.broadcast %cst_12 : f32 to vector<8x96xf32>
    %14 = arith.addf %13, %12 : vector<8x96xf32>
    %15 = arith.divf %13, %14 : vector<8x96xf32>
    %16 = vector.extract_strided_slice %15 {offsets = [0, 0], sizes = [8, 32], strides = [1, 1]} : vector<8x96xf32> to vector<8x32xf32>
    %17 = vector.extract_strided_slice %15 {offsets = [0, 32], sizes = [8, 32], strides = [1, 1]} : vector<8x96xf32> to vector<8x32xf32>
    %18 = vector.extract_strided_slice %15 {offsets = [0, 64], sizes = [8, 32], strides = [1, 1]} : vector<8x96xf32> to vector<8x32xf32>
    %19 = vector.extract_strided_slice %9 {offsets = [0, 96], sizes = [8, 32], strides = [1, 1]} : vector<8x128xf32> to vector<8x32xf32>
    %20 = math.tanh %19 : vector<8x32xf32>
    %c0_13 = arith.constant 0 : index
    %c0_14 = arith.constant 0 : index
    %21 = vector.load %arg10[%c0_13, %c0_14] : memref<8x32xf32, #tpu.memory_space<vmem>>, vector<8x32xf32>
    %22 = arith.mulf %17, %21 : vector<8x32xf32>
    %23 = arith.mulf %16, %20 : vector<8x32xf32>
    %24 = arith.addf %22, %23 : vector<8x32xf32>
    %25 = math.tanh %24 : vector<8x32xf32>
    %26 = arith.mulf %18, %25 : vector<8x32xf32>
    %c0_15 = arith.constant 0 : index
    %c0_16 = arith.constant 0 : index
    %27 = vector.load %arg9[%c0_15, %c0_16] : memref<8x32xf32, #tpu.memory_space<vmem>>, vector<8x32xf32>
    tpu.vector_store %arg9[%c0_15, %c0_16], %26 {strides = array<i32>} : memref<8x32xf32, #tpu.memory_space<vmem>>, vector<8x32xf32>,
    %c0_17 = arith.constant 0 : index
    %c0_18 = arith.constant 0 : index
    %28 = vector.load %arg10[%c0_17, %c0_18] : memref<8x32xf32, #tpu.memory_space<vmem>>, vector<8x32xf32>
    tpu.vector_store %arg10[%c0_17, %c0_18], %24 {strides = array<i32>} : memref<8x32xf32, #tpu.memory_space<vmem>>, vector<8x32xf32>,
    %c0_19 = arith.constant 0 : index
    %c0_20 = arith.constant 0 : index
    %29 = vector.load %arg8[%c0_19, %c0_20] : memref<64x32xf32, #tpu.memory_space<vmem>>, vector<8x32xf32>
    tpu.vector_store %arg8[%c0_19, %c0_20], %26 {strides = array<i32>} : memref<64x32xf32, #tpu.memory_space<vmem>>, vector<8x32xf32>,
    %c8 = arith.constant 8 : index
    %c0_21 = arith.constant 0 : index
    %30 = vector.load %arg1[%c8, %c0_21] : memref<64x128xf32, #tpu.memory_space<vmem>>, vector<8x128xf32>
    %c0_22 = arith.constant 0 : index
    %c0_23 = arith.constant 0 : index
    %31 = vector.load %arg9[%c0_22, %c0_23] : memref<8x32xf32, #tpu.memory_space<vmem>>, vector<8x32xf32>
    %cst_24 = arith.constant dense<0.000000e+00> : vector<8x128xf32>
    %32 = tpu.matmul %31, %1, %cst_24 {dimension_numbers = #tpu.dot_dimension_numbers<[1], [0], [0], [1], [0, 0, 1, 1], [], []>} : vector<8x32xf32>, vector<32x128xf32>, vector<8x128xf32> -> vector<8x128xf32>
    %33 = arith.addf %30, %32 : vector<8x128xf32>
    %34 = vector.extract_strided_slice %33 {offsets = [0, 0], sizes = [8, 96], strides = [1, 1]} : vector<8x128xf32> to vector<8x96xf32>
    %35 = arith.negf %34 : vector<8x96xf32>
    %36 = math.exp %35 : vector<8x96xf32>
    %cst_25 = arith.constant 1.000000e+00 : f32
    %37 = vector.broadcast %cst_25 : f32 to vector<8x96xf32>
    %38 = arith.addf %37, %36 : vector<8x96xf32>
    %39 = arith.divf %37, %38 : vector<8x96xf32>
    %40 = vector.extract_strided_slice %39 {offsets = [0, 0], sizes = [8, 32], strides = [1, 1]} : vector<8x96xf32> to vector<8x32xf32>
    %41 = vector.extract_strided_slice %39 {offsets = [0, 32], sizes = [8, 32], strides = [1, 1]} : vector<8x96xf32> to vector<8x32xf32>
    %42 = vector.extract_strided_slice %39 {offsets = [0, 64], sizes = [8, 32], strides = [1, 1]} : vector<8x96xf32> to vector<8x32xf32>
    %43 = vector.extract_strided_slice %33 {offsets = [0, 96], sizes = [8, 32], strides = [1, 1]} : vector<8x128xf32> to vector<8x32xf32>
    %44 = math.tanh %43 : vector<8x32xf32>
    %c0_26 = arith.constant 0 : index
    %c0_27 = arith.constant 0 : index
    %45 = vector.load %arg10[%c0_26, %c0_27] : memref<8x32xf32, #tpu.memory_space<vmem>>, vector<8x32xf32>
    %46 = arith.mulf %41, %45 : vector<8x32xf32>
    %47 = arith.mulf %40, %44 : vector<8x32xf32>
    %48 = arith.addf %46, %47 : vector<8x32xf32>
    %49 = math.tanh %48 : vector<8x32xf32>
    %50 = arith.mulf %42, %49 : vector<8x32xf32>
    %c0_28 = arith.constant 0 : index
    %c0_29 = arith.constant 0 : index
    %51 = vector.load %arg9[%c0_28, %c0_29] : memref<8x32xf32, #tpu.memory_space<vmem>>, vector<8x32xf32>
    tpu.vector_store %arg9[%c0_28, %c0_29], %50 {strides = array<i32>} : memref<8x32xf32, #tpu.memory_space<vmem>>, vector<8x32xf32>,
    %c0_30 = arith.constant 0 : index
    %c0_31 = arith.constant 0 : index
    %52 = vector.load %arg10[%c0_30, %c0_31] : memref<8x32xf32, #tpu.memory_space<vmem>>, vector<8x32xf32>
    tpu.vector_store %arg10[%c0_30, %c0_31], %48 {strides = array<i32>} : memref<8x32xf32, #tpu.memory_space<vmem>>, vector<8x32xf32>,
    %c8_32 = arith.constant 8 : index
    %c0_33 = arith.constant 0 : index
    %53 = vector.load %arg8[%c8_32, %c0_33] : memref<64x32xf32, #tpu.memory_space<vmem>>, vector<8x32xf32>
    tpu.vector_store %arg8[%c8_32, %c0_33], %50 {strides = array<i32>} : memref<64x32xf32, #tpu.memory_space<vmem>>, vector<8x32xf32>,
    %c16 = arith.constant 16 : index
    %c0_34 = arith.constant 0 : index
    %54 = vector.load %arg1[%c16, %c0_34] : memref<64x128xf32, #tpu.memory_space<vmem>>, vector<8x128xf32>
    %c0_35 = arith.constant 0 : index
    %c0_36 = arith.constant 0 : index
    %55 = vector.load %arg9[%c0_35, %c0_36] : memref<8x32xf32, #tpu.memory_space<vmem>>, vector<8x32xf32>
    %cst_37 = arith.constant dense<0.000000e+00> : vector<8x128xf32>
    %56 = tpu.matmul %55, %1, %cst_37 {dimension_numbers = #tpu.dot_dimension_numbers<[1], [0], [0], [1], [0, 0, 1, 1], [], []>} : vector<8x32xf32>, vector<32x128xf32>, vector<8x128xf32> -> vector<8x128xf32>
    %57 = arith.addf %54, %56 : vector<8x128xf32>
    %58 = vector.extract_strided_slice %57 {offsets = [0, 0], sizes = [8, 96], strides = [1, 1]} : vector<8x128xf32> to vector<8x96xf32>
    %59 = arith.negf %58 : vector<8x96xf32>
    %60 = math.exp %59 : vector<8x96xf32>
    %cst_38 = arith.constant 1.000000e+00 : f32
    %61 = vector.broadcast %cst_38 : f32 to vector<8x96xf32>
    %62 = arith.addf %61, %60 : vector<8x96xf32>
    %63 = arith.divf %61, %62 : vector<8x96xf32>
    %64 = vector.extract_strided_slice %63 {offsets = [0, 0], sizes = [8, 32], strides = [1, 1]} : vector<8x96xf32> to vector<8x32xf32>
    %65 = vector.extract_strided_slice %63 {offsets = [0, 32], sizes = [8, 32], strides = [1, 1]} : vector<8x96xf32> to vector<8x32xf32>
    %66 = vector.extract_strided_slice %63 {offsets = [0, 64], sizes = [8, 32], strides = [1, 1]} : vector<8x96xf32> to vector<8x32xf32>
    %67 = vector.extract_strided_slice %57 {offsets = [0, 96], sizes = [8, 32], strides = [1, 1]} : vector<8x128xf32> to vector<8x32xf32>
    %68 = math.tanh %67 : vector<8x32xf32>
    %c0_39 = arith.constant 0 : index
    %c0_40 = arith.constant 0 : index
    %69 = vector.load %arg10[%c0_39, %c0_40] : memref<8x32xf32, #tpu.memory_space<vmem>>, vector<8x32xf32>
    %70 = arith.mulf %65, %69 : vector<8x32xf32>
    %71 = arith.mulf %64, %68 : vector<8x32xf32>
    %72 = arith.addf %70, %71 : vector<8x32xf32>
    %73 = math.tanh %72 : vector<8x32xf32>
    %74 = arith.mulf %66, %73 : vector<8x32xf32>
    %c0_41 = arith.constant 0 : index
    %c0_42 = arith.constant 0 : index
    %75 = vector.load %arg9[%c0_41, %c0_42] : memref<8x32xf32, #tpu.memory_space<vmem>>, vector<8x32xf32>
    tpu.vector_store %arg9[%c0_41, %c0_42], %74 {strides = array<i32>} : memref<8x32xf32, #tpu.memory_space<vmem>>, vector<8x32xf32>,
    %c0_43 = arith.constant 0 : index
    %c0_44 = arith.constant 0 : index
    %76 = vector.load %arg10[%c0_43, %c0_44] : memref<8x32xf32, #tpu.memory_space<vmem>>, vector<8x32xf32>
    tpu.vector_store %arg10[%c0_43, %c0_44], %72 {strides = array<i32>} : memref<8x32xf32, #tpu.memory_space<vmem>>, vector<8x32xf32>,
    %c16_45 = arith.constant 16 : index
    %c0_46 = arith.constant 0 : index
    %77 = vector.load %arg8[%c16_45, %c0_46] : memref<64x32xf32, #tpu.memory_space<vmem>>, vector<8x32xf32>
    tpu.vector_store %arg8[%c16_45, %c0_46], %74 {strides = array<i32>} : memref<64x32xf32, #tpu.memory_space<vmem>>, vector<8x32xf32>,
    %c24 = arith.constant 24 : index
    %c0_47 = arith.constant 0 : index
    %78 = vector.load %arg1[%c24, %c0_47] : memref<64x128xf32, #tpu.memory_space<vmem>>, vector<8x128xf32>
    %c0_48 = arith.constant 0 : index
    %c0_49 = arith.constant 0 : index
    %79 = vector.load %arg9[%c0_48, %c0_49] : memref<8x32xf32, #tpu.memory_space<vmem>>, vector<8x32xf32>
    %cst_50 = arith.constant dense<0.000000e+00> : vector<8x128xf32>
    %80 = tpu.matmul %79, %1, %cst_50 {dimension_numbers = #tpu.dot_dimension_numbers<[1], [0], [0], [1], [0, 0, 1, 1], [], []>} : vector<8x32xf32>, vector<32x128xf32>, vector<8x128xf32> -> vector<8x128xf32>
    %81 = arith.addf %78, %80 : vector<8x128xf32>
    %82 = vector.extract_strided_slice %81 {offsets = [0, 0], sizes = [8, 96], strides = [1, 1]} : vector<8x128xf32> to vector<8x96xf32>
    %83 = arith.negf %82 : vector<8x96xf32>
    %84 = math.exp %83 : vector<8x96xf32>
    %cst_51 = arith.constant 1.000000e+00 : f32
    %85 = vector.broadcast %cst_51 : f32 to vector<8x96xf32>
    %86 = arith.addf %85, %84 : vector<8x96xf32>
    %87 = arith.divf %85, %86 : vector<8x96xf32>
    %88 = vector.extract_strided_slice %87 {offsets = [0, 0], sizes = [8, 32], strides = [1, 1]} : vector<8x96xf32> to vector<8x32xf32>
    %89 = vector.extract_strided_slice %87 {offsets = [0, 32], sizes = [8, 32], strides = [1, 1]} : vector<8x96xf32> to vector<8x32xf32>
    %90 = vector.extract_strided_slice %87 {offsets = [0, 64], sizes = [8, 32], strides = [1, 1]} : vector<8x96xf32> to vector<8x32xf32>
    %91 = vector.extract_strided_slice %81 {offsets = [0, 96], sizes = [8, 32], strides = [1, 1]} : vector<8x128xf32> to vector<8x32xf32>
    %92 = math.tanh %91 : vector<8x32xf32>
    %c0_52 = arith.constant 0 : index
    %c0_53 = arith.constant 0 : index
    %93 = vector.load %arg10[%c0_52, %c0_53] : memref<8x32xf32, #tpu.memory_space<vmem>>, vector<8x32xf32>
    %94 = arith.mulf %89, %93 : vector<8x32xf32>
    %95 = arith.mulf %88, %92 : vector<8x32xf32>
    %96 = arith.addf %94, %95 : vector<8x32xf32>
    %97 = math.tanh %96 : vector<8x32xf32>
    %98 = arith.mulf %90, %97 : vector<8x32xf32>
    %c0_54 = arith.constant 0 : index
    %c0_55 = arith.constant 0 : index
    %99 = vector.load %arg9[%c0_54, %c0_55] : memref<8x32xf32, #tpu.memory_space<vmem>>, vector<8x32xf32>
    tpu.vector_store %arg9[%c0_54, %c0_55], %98 {strides = array<i32>} : memref<8x32xf32, #tpu.memory_space<vmem>>, vector<8x32xf32>,
    %c0_56 = arith.constant 0 : index
    %c0_57 = arith.constant 0 : index
    %100 = vector.load %arg10[%c0_56, %c0_57] : memref<8x32xf32, #tpu.memory_space<vmem>>, vector<8x32xf32>
    tpu.vector_store %arg10[%c0_56, %c0_57], %96 {strides = array<i32>} : memref<8x32xf32, #tpu.memory_space<vmem>>, vector<8x32xf32>,
    %c24_58 = arith.constant 24 : index
    %c0_59 = arith.constant 0 : index
    %101 = vector.load %arg8[%c24_58, %c0_59] : memref<64x32xf32, #tpu.memory_space<vmem>>, vector<8x32xf32>
    tpu.vector_store %arg8[%c24_58, %c0_59], %98 {strides = array<i32>} : memref<64x32xf32, #tpu.memory_space<vmem>>, vector<8x32xf32>,
    %c32 = arith.constant 32 : index
    %c0_60 = arith.constant 0 : index
    %102 = vector.load %arg1[%c32, %c0_60] : memref<64x128xf32, #tpu.memory_space<vmem>>, vector<8x128xf32>
    %c0_61 = arith.constant 0 : index
    %c0_62 = arith.constant 0 : index
    %103 = vector.load %arg9[%c0_61, %c0_62] : memref<8x32xf32, #tpu.memory_space<vmem>>, vector<8x32xf32>
    %cst_63 = arith.constant dense<0.000000e+00> : vector<8x128xf32>
    %104 = tpu.matmul %103, %1, %cst_63 {dimension_numbers = #tpu.dot_dimension_numbers<[1], [0], [0], [1], [0, 0, 1, 1], [], []>} : vector<8x32xf32>, vector<32x128xf32>, vector<8x128xf32> -> vector<8x128xf32>
    %105 = arith.addf %102, %104 : vector<8x128xf32>
    %106 = vector.extract_strided_slice %105 {offsets = [0, 0], sizes = [8, 96], strides = [1, 1]} : vector<8x128xf32> to vector<8x96xf32>
    %107 = arith.negf %106 : vector<8x96xf32>
    %108 = math.exp %107 : vector<8x96xf32>
    %cst_64 = arith.constant 1.000000e+00 : f32
    %109 = vector.broadcast %cst_64 : f32 to vector<8x96xf32>
    %110 = arith.addf %109, %108 : vector<8x96xf32>
    %111 = arith.divf %109, %110 : vector<8x96xf32>
    %112 = vector.extract_strided_slice %111 {offsets = [0, 0], sizes = [8, 32], strides = [1, 1]} : vector<8x96xf32> to vector<8x32xf32>
    %113 = vector.extract_strided_slice %111 {offsets = [0, 32], sizes = [8, 32], strides = [1, 1]} : vector<8x96xf32> to vector<8x32xf32>
    %114 = vector.extract_strided_slice %111 {offsets = [0, 64], sizes = [8, 32], strides = [1, 1]} : vector<8x96xf32> to vector<8x32xf32>
    %115 = vector.extract_strided_slice %105 {offsets = [0, 96], sizes = [8, 32], strides = [1, 1]} : vector<8x128xf32> to vector<8x32xf32>
    %116 = math.tanh %115 : vector<8x32xf32>
    %c0_65 = arith.constant 0 : index
    %c0_66 = arith.constant 0 : index
    %117 = vector.load %arg10[%c0_65, %c0_66] : memref<8x32xf32, #tpu.memory_space<vmem>>, vector<8x32xf32>
    %118 = arith.mulf %113, %117 : vector<8x32xf32>
    %119 = arith.mulf %112, %116 : vector<8x32xf32>
    %120 = arith.addf %118, %119 : vector<8x32xf32>
    %121 = math.tanh %120 : vector<8x32xf32>
    %122 = arith.mulf %114, %121 : vector<8x32xf32>
    %c0_67 = arith.constant 0 : index
    %c0_68 = arith.constant 0 : index
    %123 = vector.load %arg9[%c0_67, %c0_68] : memref<8x32xf32, #tpu.memory_space<vmem>>, vector<8x32xf32>
    tpu.vector_store %arg9[%c0_67, %c0_68], %122 {strides = array<i32>} : memref<8x32xf32, #tpu.memory_space<vmem>>, vector<8x32xf32>,
    %c0_69 = arith.constant 0 : index
    %c0_70 = arith.constant 0 : index
    %124 = vector.load %arg10[%c0_69, %c0_70] : memref<8x32xf32, #tpu.memory_space<vmem>>, vector<8x32xf32>
    tpu.vector_store %arg10[%c0_69, %c0_70], %120 {strides = array<i32>} : memref<8x32xf32, #tpu.memory_space<vmem>>, vector<8x32xf32>,
    %c32_71 = arith.constant 32 : index
    %c0_72 = arith.constant 0 : index
    %125 = vector.load %arg8[%c32_71, %c0_72] : memref<64x32xf32, #tpu.memory_space<vmem>>, vector<8x32xf32>
    tpu.vector_store %arg8[%c32_71, %c0_72], %122 {strides = array<i32>} : memref<64x32xf32, #tpu.memory_space<vmem>>, vector<8x32xf32>,
    %c40 = arith.constant 40 : index
    %c0_73 = arith.constant 0 : index
    %126 = vector.load %arg1[%c40, %c0_73] : memref<64x128xf32, #tpu.memory_space<vmem>>, vector<8x128xf32>
    %c0_74 = arith.constant 0 : index
    %c0_75 = arith.constant 0 : index
    %127 = vector.load %arg9[%c0_74, %c0_75] : memref<8x32xf32, #tpu.memory_space<vmem>>, vector<8x32xf32>
    %cst_76 = arith.constant dense<0.000000e+00> : vector<8x128xf32>
    %128 = tpu.matmul %127, %1, %cst_76 {dimension_numbers = #tpu.dot_dimension_numbers<[1], [0], [0], [1], [0, 0, 1, 1], [], []>} : vector<8x32xf32>, vector<32x128xf32>, vector<8x128xf32> -> vector<8x128xf32>
    %129 = arith.addf %126, %128 : vector<8x128xf32>
    %130 = vector.extract_strided_slice %129 {offsets = [0, 0], sizes = [8, 96], strides = [1, 1]} : vector<8x128xf32> to vector<8x96xf32>
    %131 = arith.negf %130 : vector<8x96xf32>
    %132 = math.exp %131 : vector<8x96xf32>
    %cst_77 = arith.constant 1.000000e+00 : f32
    %133 = vector.broadcast %cst_77 : f32 to vector<8x96xf32>
    %134 = arith.addf %133, %132 : vector<8x96xf32>
    %135 = arith.divf %133, %134 : vector<8x96xf32>
    %136 = vector.extract_strided_slice %135 {offsets = [0, 0], sizes = [8, 32], strides = [1, 1]} : vector<8x96xf32> to vector<8x32xf32>
    %137 = vector.extract_strided_slice %135 {offsets = [0, 32], sizes = [8, 32], strides = [1, 1]} : vector<8x96xf32> to vector<8x32xf32>
    %138 = vector.extract_strided_slice %135 {offsets = [0, 64], sizes = [8, 32], strides = [1, 1]} : vector<8x96xf32> to vector<8x32xf32>
    %139 = vector.extract_strided_slice %129 {offsets = [0, 96], sizes = [8, 32], strides = [1, 1]} : vector<8x128xf32> to vector<8x32xf32>
    %140 = math.tanh %139 : vector<8x32xf32>
    %c0_78 = arith.constant 0 : index
    %c0_79 = arith.constant 0 : index
    %141 = vector.load %arg10[%c0_78, %c0_79] : memref<8x32xf32, #tpu.memory_space<vmem>>, vector<8x32xf32>
    %142 = arith.mulf %137, %141 : vector<8x32xf32>
    %143 = arith.mulf %136, %140 : vector<8x32xf32>
    %144 = arith.addf %142, %143 : vector<8x32xf32>
    %145 = math.tanh %144 : vector<8x32xf32>
    %146 = arith.mulf %138, %145 : vector<8x32xf32>
    %c0_80 = arith.constant 0 : index
    %c0_81 = arith.constant 0 : index
    %147 = vector.load %arg9[%c0_80, %c0_81] : memref<8x32xf32, #tpu.memory_space<vmem>>, vector<8x32xf32>
    tpu.vector_store %arg9[%c0_80, %c0_81], %146 {strides = array<i32>} : memref<8x32xf32, #tpu.memory_space<vmem>>, vector<8x32xf32>,
    %c0_82 = arith.constant 0 : index
    %c0_83 = arith.constant 0 : index
    %148 = vector.load %arg10[%c0_82, %c0_83] : memref<8x32xf32, #tpu.memory_space<vmem>>, vector<8x32xf32>
    tpu.vector_store %arg10[%c0_82, %c0_83], %144 {strides = array<i32>} : memref<8x32xf32, #tpu.memory_space<vmem>>, vector<8x32xf32>,
    %c40_84 = arith.constant 40 : index
    %c0_85 = arith.constant 0 : index
    %149 = vector.load %arg8[%c40_84, %c0_85] : memref<64x32xf32, #tpu.memory_space<vmem>>, vector<8x32xf32>
    tpu.vector_store %arg8[%c40_84, %c0_85], %146 {strides = array<i32>} : memref<64x32xf32, #tpu.memory_space<vmem>>, vector<8x32xf32>,
    %c48 = arith.constant 48 : index
    %c0_86 = arith.constant 0 : index
    %150 = vector.load %arg1[%c48, %c0_86] : memref<64x128xf32, #tpu.memory_space<vmem>>, vector<8x128xf32>
    %c0_87 = arith.constant 0 : index
    %c0_88 = arith.constant 0 : index
    %151 = vector.load %arg9[%c0_87, %c0_88] : memref<8x32xf32, #tpu.memory_space<vmem>>, vector<8x32xf32>
    %cst_89 = arith.constant dense<0.000000e+00> : vector<8x128xf32>
    %152 = tpu.matmul %151, %1, %cst_89 {dimension_numbers = #tpu.dot_dimension_numbers<[1], [0], [0], [1], [0, 0, 1, 1], [], []>} : vector<8x32xf32>, vector<32x128xf32>, vector<8x128xf32> -> vector<8x128xf32>
    %153 = arith.addf %150, %152 : vector<8x128xf32>
    %154 = vector.extract_strided_slice %153 {offsets = [0, 0], sizes = [8, 96], strides = [1, 1]} : vector<8x128xf32> to vector<8x96xf32>
    %155 = arith.negf %154 : vector<8x96xf32>
    %156 = math.exp %155 : vector<8x96xf32>
    %cst_90 = arith.constant 1.000000e+00 : f32
    %157 = vector.broadcast %cst_90 : f32 to vector<8x96xf32>
    %158 = arith.addf %157, %156 : vector<8x96xf32>
    %159 = arith.divf %157, %158 : vector<8x96xf32>
    %160 = vector.extract_strided_slice %159 {offsets = [0, 0], sizes = [8, 32], strides = [1, 1]} : vector<8x96xf32> to vector<8x32xf32>
    %161 = vector.extract_strided_slice %159 {offsets = [0, 32], sizes = [8, 32], strides = [1, 1]} : vector<8x96xf32> to vector<8x32xf32>
    %162 = vector.extract_strided_slice %159 {offsets = [0, 64], sizes = [8, 32], strides = [1, 1]} : vector<8x96xf32> to vector<8x32xf32>
    %163 = vector.extract_strided_slice %153 {offsets = [0, 96], sizes = [8, 32], strides = [1, 1]} : vector<8x128xf32> to vector<8x32xf32>
    %164 = math.tanh %163 : vector<8x32xf32>
    %c0_91 = arith.constant 0 : index
    %c0_92 = arith.constant 0 : index
    %165 = vector.load %arg10[%c0_91, %c0_92] : memref<8x32xf32, #tpu.memory_space<vmem>>, vector<8x32xf32>
    %166 = arith.mulf %161, %165 : vector<8x32xf32>
    %167 = arith.mulf %160, %164 : vector<8x32xf32>
    %168 = arith.addf %166, %167 : vector<8x32xf32>
    %169 = math.tanh %168 : vector<8x32xf32>
    %170 = arith.mulf %162, %169 : vector<8x32xf32>
    %c0_93 = arith.constant 0 : index
    %c0_94 = arith.constant 0 : index
    %171 = vector.load %arg9[%c0_93, %c0_94] : memref<8x32xf32, #tpu.memory_space<vmem>>, vector<8x32xf32>
    tpu.vector_store %arg9[%c0_93, %c0_94], %170 {strides = array<i32>} : memref<8x32xf32, #tpu.memory_space<vmem>>, vector<8x32xf32>,
    %c0_95 = arith.constant 0 : index
    %c0_96 = arith.constant 0 : index
    %172 = vector.load %arg10[%c0_95, %c0_96] : memref<8x32xf32, #tpu.memory_space<vmem>>, vector<8x32xf32>
    tpu.vector_store %arg10[%c0_95, %c0_96], %168 {strides = array<i32>} : memref<8x32xf32, #tpu.memory_space<vmem>>, vector<8x32xf32>,
    %c48_97 = arith.constant 48 : index
    %c0_98 = arith.constant 0 : index
    %173 = vector.load %arg8[%c48_97, %c0_98] : memref<64x32xf32, #tpu.memory_space<vmem>>, vector<8x32xf32>
    tpu.vector_store %arg8[%c48_97, %c0_98], %170 {strides = array<i32>} : memref<64x32xf32, #tpu.memory_space<vmem>>, vector<8x32xf32>,
    %c56 = arith.constant 56 : index
    %c0_99 = arith.constant 0 : index
    %174 = vector.load %arg1[%c56, %c0_99] : memref<64x128xf32, #tpu.memory_space<vmem>>, vector<8x128xf32>
    %c0_100 = arith.constant 0 : index
    %c0_101 = arith.constant 0 : index
    %175 = vector.load %arg9[%c0_100, %c0_101] : memref<8x32xf32, #tpu.memory_space<vmem>>, vector<8x32xf32>
    %cst_102 = arith.constant dense<0.000000e+00> : vector<8x128xf32>
    %176 = tpu.matmul %175, %1, %cst_102 {dimension_numbers = #tpu.dot_dimension_numbers<[1], [0], [0], [1], [0, 0, 1, 1], [], []>} : vector<8x32xf32>, vector<32x128xf32>, vector<8x128xf32> -> vector<8x128xf32>
    %177 = arith.addf %174, %176 : vector<8x128xf32>
    %178 = vector.extract_strided_slice %177 {offsets = [0, 0], sizes = [8, 96], strides = [1, 1]} : vector<8x128xf32> to vector<8x96xf32>
    %179 = arith.negf %178 : vector<8x96xf32>
    %180 = math.exp %179 : vector<8x96xf32>
    %cst_103 = arith.constant 1.000000e+00 : f32
    %181 = vector.broadcast %cst_103 : f32 to vector<8x96xf32>
    %182 = arith.addf %181, %180 : vector<8x96xf32>
    %183 = arith.divf %181, %182 : vector<8x96xf32>
    %184 = vector.extract_strided_slice %183 {offsets = [0, 0], sizes = [8, 32], strides = [1, 1]} : vector<8x96xf32> to vector<8x32xf32>
    %185 = vector.extract_strided_slice %183 {offsets = [0, 32], sizes = [8, 32], strides = [1, 1]} : vector<8x96xf32> to vector<8x32xf32>
    %186 = vector.extract_strided_slice %183 {offsets = [0, 64], sizes = [8, 32], strides = [1, 1]} : vector<8x96xf32> to vector<8x32xf32>
    %187 = vector.extract_strided_slice %177 {offsets = [0, 96], sizes = [8, 32], strides = [1, 1]} : vector<8x128xf32> to vector<8x32xf32>
    %188 = math.tanh %187 : vector<8x32xf32>
    %c0_104 = arith.constant 0 : index
    %c0_105 = arith.constant 0 : index
    %189 = vector.load %arg10[%c0_104, %c0_105] : memref<8x32xf32, #tpu.memory_space<vmem>>, vector<8x32xf32>
    %190 = arith.mulf %185, %189 : vector<8x32xf32>
    %191 = arith.mulf %184, %188 : vector<8x32xf32>
    %192 = arith.addf %190, %191 : vector<8x32xf32>
    %193 = math.tanh %192 : vector<8x32xf32>
    %194 = arith.mulf %186, %193 : vector<8x32xf32>
    %c0_106 = arith.constant 0 : index
    %c0_107 = arith.constant 0 : index
    %195 = vector.load %arg9[%c0_106, %c0_107] : memref<8x32xf32, #tpu.memory_space<vmem>>, vector<8x32xf32>
    tpu.vector_store %arg9[%c0_106, %c0_107], %194 {strides = array<i32>} : memref<8x32xf32, #tpu.memory_space<vmem>>, vector<8x32xf32>,
    %c0_108 = arith.constant 0 : index
    %c0_109 = arith.constant 0 : index
    %196 = vector.load %arg10[%c0_108, %c0_109] : memref<8x32xf32, #tpu.memory_space<vmem>>, vector<8x32xf32>
    tpu.vector_store %arg10[%c0_108, %c0_109], %192 {strides = array<i32>} : memref<8x32xf32, #tpu.memory_space<vmem>>, vector<8x32xf32>,
    %c56_110 = arith.constant 56 : index
    %c0_111 = arith.constant 0 : index
    %197 = vector.load %arg8[%c56_110, %c0_111] : memref<64x32xf32, #tpu.memory_space<vmem>>, vector<8x32xf32>
    tpu.vector_store %arg8[%c56_110, %c0_111], %194 {strides = array<i32>} : memref<64x32xf32, #tpu.memory_space<vmem>>, vector<8x32xf32>,
    %c0_112 = arith.constant 0 : index
    %c0_113 = arith.constant 0 : index
    %198 = vector.load %arg9[%c0_112, %c0_113] : memref<8x32xf32, #tpu.memory_space<vmem>>, vector<8x32xf32>
    %c0_114 = arith.constant 0 : index
    %c0_115 = arith.constant 0 : index
    %c0_116 = arith.constant 0 : index
    %199 = vector.load %arg5[%c0_114, %c0_115, %c0_116] : memref<2x8x32xf32, #tpu.memory_space<vmem>>, vector<1x8x32xf32>
    %200 = vector.shape_cast %199 : vector<1x8x32xf32> to vector<8x32xf32>
    %201 = vector.shape_cast %198 : vector<8x32xf32> to vector<1x8x32xf32>
    tpu.vector_store %arg5[%c0_114, %c0_115, %c0_116], %201 {strides = array<i32>} : memref<2x8x32xf32, #tpu.memory_space<vmem>>, vector<1x8x32xf32>,
    %c0_117 = arith.constant 0 : index
    %c0_118 = arith.constant 0 : index
    %202 = vector.load %arg10[%c0_117, %c0_118] : memref<8x32xf32, #tpu.memory_space<vmem>>, vector<8x32xf32>
    %c0_119 = arith.constant 0 : index
    %c0_120 = arith.constant 0 : index
    %c0_121 = arith.constant 0 : index
    %203 = vector.load %arg6[%c0_119, %c0_120, %c0_121] : memref<2x8x32xf32, #tpu.memory_space<vmem>>, vector<1x8x32xf32>
    %204 = vector.shape_cast %203 : vector<1x8x32xf32> to vector<8x32xf32>
    %205 = vector.shape_cast %202 : vector<8x32xf32> to vector<1x8x32xf32>
    tpu.vector_store %arg6[%c0_119, %c0_120, %c0_121], %205 {strides = array<i32>} : memref<2x8x32xf32, #tpu.memory_space<vmem>>, vector<1x8x32xf32>,
    %c0_122 = arith.constant 0 : index
    %c0_123 = arith.constant 0 : index
    %206 = vector.load %arg8[%c0_122, %c0_123] : memref<64x32xf32, #tpu.memory_space<vmem>>, vector<64x32xf32>
    %c0_124 = arith.constant 0 : index
    %c0_125 = arith.constant 0 : index
    %c0_126 = arith.constant 0 : index
    %207 = vector.load %arg2[%c0_124, %c0_125, %c0_126] : memref<1x32x128xf32, #tpu.memory_space<vmem>>, vector<1x32x128xf32>
    %208 = vector.shape_cast %207 : vector<1x32x128xf32> to vector<32x128xf32>
    %cst_127 = arith.constant dense<0.000000e+00> : vector<64x128xf32>
    %209 = tpu.matmul %206, %208, %cst_127 {dimension_numbers = #tpu.dot_dimension_numbers<[1], [0], [0], [1], [0, 0, 1, 1], [], []>} : vector<64x32xf32>, vector<32x128xf32>, vector<64x128xf32> -> vector<64x128xf32>
    %c0_128 = arith.constant 0 : index
    %c0_129 = arith.constant 0 : index
    %c0_130 = arith.constant 0 : index
    %210 = vector.load %arg3[%c0_128, %c0_129, %c0_130] : memref<1x1x128xf32, #tpu.memory_space<vmem>>, vector<1x1x128xf32>
    %211 = vector.shape_cast %210 : vector<1x1x128xf32> to vector<1x128xf32>
    %212 = vector.broadcast %211 : vector<1x128xf32> to vector<64x128xf32>
    %213 = arith.addf %209, %212 : vector<64x128xf32>
    %c0_131 = arith.constant 0 : index
    %c0_132 = arith.constant 0 : index
    %214 = vector.load %arg7[%c0_131, %c0_132] : memref<64x128xf32, #tpu.memory_space<vmem>>, vector<64x128xf32>
    tpu.vector_store %arg7[%c0_131, %c0_132], %213 {strides = array<i32>} : memref<64x128xf32, #tpu.memory_space<vmem>>, vector<64x128xf32>,
    %c1 = arith.constant 1 : index
    %c0_133 = arith.constant 0 : index
    %c0_134 = arith.constant 0 : index
    %215 = vector.load %arg4[%c1, %c0_133, %c0_134] : memref<2x32x128xf32, #tpu.memory_space<vmem>>, vector<1x32x128xf32>
    %216 = vector.shape_cast %215 : vector<1x32x128xf32> to vector<32x128xf32>
    %cst_135 = arith.constant 0.000000e+00 : f32
    %217 = vector.broadcast %cst_135 : f32 to vector<8x32xf32>
    %c0_136 = arith.constant 0 : index
    %c0_137 = arith.constant 0 : index
    %218 = vector.load %arg9[%c0_136, %c0_137] : memref<8x32xf32, #tpu.memory_space<vmem>>, vector<8x32xf32>
    tpu.vector_store %arg9[%c0_136, %c0_137], %217 {strides = array<i32>} : memref<8x32xf32, #tpu.memory_space<vmem>>, vector<8x32xf32>,
    %cst_138 = arith.constant 0.000000e+00 : f32
    %219 = vector.broadcast %cst_138 : f32 to vector<8x32xf32>
    %c0_139 = arith.constant 0 : index
    %c0_140 = arith.constant 0 : index
    %220 = vector.load %arg10[%c0_139, %c0_140] : memref<8x32xf32, #tpu.memory_space<vmem>>, vector<8x32xf32>
    tpu.vector_store %arg10[%c0_139, %c0_140], %219 {strides = array<i32>} : memref<8x32xf32, #tpu.memory_space<vmem>>, vector<8x32xf32>,
    %c0_141 = arith.constant 0 : index
    %c0_142 = arith.constant 0 : index
    %221 = vector.load %arg7[%c0_141, %c0_142] : memref<64x128xf32, #tpu.memory_space<vmem>>, vector<8x128xf32>
    %c0_143 = arith.constant 0 : index
    %c0_144 = arith.constant 0 : index
    %222 = vector.load %arg9[%c0_143, %c0_144] : memref<8x32xf32, #tpu.memory_space<vmem>>, vector<8x32xf32>
    %cst_145 = arith.constant dense<0.000000e+00> : vector<8x128xf32>
    %223 = tpu.matmul %222, %216, %cst_145 {dimension_numbers = #tpu.dot_dimension_numbers<[1], [0], [0], [1], [0, 0, 1, 1], [], []>} : vector<8x32xf32>, vector<32x128xf32>, vector<8x128xf32> -> vector<8x128xf32>
    %224 = arith.addf %221, %223 : vector<8x128xf32>
    %225 = vector.extract_strided_slice %224 {offsets = [0, 0], sizes = [8, 96], strides = [1, 1]} : vector<8x128xf32> to vector<8x96xf32>
    %226 = arith.negf %225 : vector<8x96xf32>
    %227 = math.exp %226 : vector<8x96xf32>
    %cst_146 = arith.constant 1.000000e+00 : f32
    %228 = vector.broadcast %cst_146 : f32 to vector<8x96xf32>
    %229 = arith.addf %228, %227 : vector<8x96xf32>
    %230 = arith.divf %228, %229 : vector<8x96xf32>
    %231 = vector.extract_strided_slice %230 {offsets = [0, 0], sizes = [8, 32], strides = [1, 1]} : vector<8x96xf32> to vector<8x32xf32>
    %232 = vector.extract_strided_slice %230 {offsets = [0, 32], sizes = [8, 32], strides = [1, 1]} : vector<8x96xf32> to vector<8x32xf32>
    %233 = vector.extract_strided_slice %230 {offsets = [0, 64], sizes = [8, 32], strides = [1, 1]} : vector<8x96xf32> to vector<8x32xf32>
    %234 = vector.extract_strided_slice %224 {offsets = [0, 96], sizes = [8, 32], strides = [1, 1]} : vector<8x128xf32> to vector<8x32xf32>
    %235 = math.tanh %234 : vector<8x32xf32>
    %c0_147 = arith.constant 0 : index
    %c0_148 = arith.constant 0 : index
    %236 = vector.load %arg10[%c0_147, %c0_148] : memref<8x32xf32, #tpu.memory_space<vmem>>, vector<8x32xf32>
    %237 = arith.mulf %232, %236 : vector<8x32xf32>
    %238 = arith.mulf %231, %235 : vector<8x32xf32>
    %239 = arith.addf %237, %238 : vector<8x32xf32>
    %240 = math.tanh %239 : vector<8x32xf32>
    %241 = arith.mulf %233, %240 : vector<8x32xf32>
    %c0_149 = arith.constant 0 : index
    %c0_150 = arith.constant 0 : index
    %242 = vector.load %arg9[%c0_149, %c0_150] : memref<8x32xf32, #tpu.memory_space<vmem>>, vector<8x32xf32>
    tpu.vector_store %arg9[%c0_149, %c0_150], %241 {strides = array<i32>} : memref<8x32xf32, #tpu.memory_space<vmem>>, vector<8x32xf32>,
    %c0_151 = arith.constant 0 : index
    %c0_152 = arith.constant 0 : index
    %243 = vector.load %arg10[%c0_151, %c0_152] : memref<8x32xf32, #tpu.memory_space<vmem>>, vector<8x32xf32>
    tpu.vector_store %arg10[%c0_151, %c0_152], %239 {strides = array<i32>} : memref<8x32xf32, #tpu.memory_space<vmem>>, vector<8x32xf32>,
    %c8_153 = arith.constant 8 : index
    %c0_154 = arith.constant 0 : index
    %244 = vector.load %arg7[%c8_153, %c0_154] : memref<64x128xf32, #tpu.memory_space<vmem>>, vector<8x128xf32>
    %c0_155 = arith.constant 0 : index
    %c0_156 = arith.constant 0 : index
    %245 = vector.load %arg9[%c0_155, %c0_156] : memref<8x32xf32, #tpu.memory_space<vmem>>, vector<8x32xf32>
    %cst_157 = arith.constant dense<0.000000e+00> : vector<8x128xf32>
    %246 = tpu.matmul %245, %216, %cst_157 {dimension_numbers = #tpu.dot_dimension_numbers<[1], [0], [0], [1], [0, 0, 1, 1], [], []>} : vector<8x32xf32>, vector<32x128xf32>, vector<8x128xf32> -> vector<8x128xf32>
    %247 = arith.addf %244, %246 : vector<8x128xf32>
    %248 = vector.extract_strided_slice %247 {offsets = [0, 0], sizes = [8, 96], strides = [1, 1]} : vector<8x128xf32> to vector<8x96xf32>
    %249 = arith.negf %248 : vector<8x96xf32>
    %250 = math.exp %249 : vector<8x96xf32>
    %cst_158 = arith.constant 1.000000e+00 : f32
    %251 = vector.broadcast %cst_158 : f32 to vector<8x96xf32>
    %252 = arith.addf %251, %250 : vector<8x96xf32>
    %253 = arith.divf %251, %252 : vector<8x96xf32>
    %254 = vector.extract_strided_slice %253 {offsets = [0, 0], sizes = [8, 32], strides = [1, 1]} : vector<8x96xf32> to vector<8x32xf32>
    %255 = vector.extract_strided_slice %253 {offsets = [0, 32], sizes = [8, 32], strides = [1, 1]} : vector<8x96xf32> to vector<8x32xf32>
    %256 = vector.extract_strided_slice %253 {offsets = [0, 64], sizes = [8, 32], strides = [1, 1]} : vector<8x96xf32> to vector<8x32xf32>
    %257 = vector.extract_strided_slice %247 {offsets = [0, 96], sizes = [8, 32], strides = [1, 1]} : vector<8x128xf32> to vector<8x32xf32>
    %258 = math.tanh %257 : vector<8x32xf32>
    %c0_159 = arith.constant 0 : index
    %c0_160 = arith.constant 0 : index
    %259 = vector.load %arg10[%c0_159, %c0_160] : memref<8x32xf32, #tpu.memory_space<vmem>>, vector<8x32xf32>
    %260 = arith.mulf %255, %259 : vector<8x32xf32>
    %261 = arith.mulf %254, %258 : vector<8x32xf32>
    %262 = arith.addf %260, %261 : vector<8x32xf32>
    %263 = math.tanh %262 : vector<8x32xf32>
    %264 = arith.mulf %256, %263 : vector<8x32xf32>
    %c0_161 = arith.constant 0 : index
    %c0_162 = arith.constant 0 : index
    %265 = vector.load %arg9[%c0_161, %c0_162] : memref<8x32xf32, #tpu.memory_space<vmem>>, vector<8x32xf32>
    tpu.vector_store %arg9[%c0_161, %c0_162], %264 {strides = array<i32>} : memref<8x32xf32, #tpu.memory_space<vmem>>, vector<8x32xf32>,
    %c0_163 = arith.constant 0 : index
    %c0_164 = arith.constant 0 : index
    %266 = vector.load %arg10[%c0_163, %c0_164] : memref<8x32xf32, #tpu.memory_space<vmem>>, vector<8x32xf32>
    tpu.vector_store %arg10[%c0_163, %c0_164], %262 {strides = array<i32>} : memref<8x32xf32, #tpu.memory_space<vmem>>, vector<8x32xf32>,
    %c16_165 = arith.constant 16 : index
    %c0_166 = arith.constant 0 : index
    %267 = vector.load %arg7[%c16_165, %c0_166] : memref<64x128xf32, #tpu.memory_space<vmem>>, vector<8x128xf32>
    %c0_167 = arith.constant 0 : index
    %c0_168 = arith.constant 0 : index
    %268 = vector.load %arg9[%c0_167, %c0_168] : memref<8x32xf32, #tpu.memory_space<vmem>>, vector<8x32xf32>
    %cst_169 = arith.constant dense<0.000000e+00> : vector<8x128xf32>
    %269 = tpu.matmul %268, %216, %cst_169 {dimension_numbers = #tpu.dot_dimension_numbers<[1], [0], [0], [1], [0, 0, 1, 1], [], []>} : vector<8x32xf32>, vector<32x128xf32>, vector<8x128xf32> -> vector<8x128xf32>
    %270 = arith.addf %267, %269 : vector<8x128xf32>
    %271 = vector.extract_strided_slice %270 {offsets = [0, 0], sizes = [8, 96], strides = [1, 1]} : vector<8x128xf32> to vector<8x96xf32>
    %272 = arith.negf %271 : vector<8x96xf32>
    %273 = math.exp %272 : vector<8x96xf32>
    %cst_170 = arith.constant 1.000000e+00 : f32
    %274 = vector.broadcast %cst_170 : f32 to vector<8x96xf32>
    %275 = arith.addf %274, %273 : vector<8x96xf32>
    %276 = arith.divf %274, %275 : vector<8x96xf32>
    %277 = vector.extract_strided_slice %276 {offsets = [0, 0], sizes = [8, 32], strides = [1, 1]} : vector<8x96xf32> to vector<8x32xf32>
    %278 = vector.extract_strided_slice %276 {offsets = [0, 32], sizes = [8, 32], strides = [1, 1]} : vector<8x96xf32> to vector<8x32xf32>
    %279 = vector.extract_strided_slice %276 {offsets = [0, 64], sizes = [8, 32], strides = [1, 1]} : vector<8x96xf32> to vector<8x32xf32>
    %280 = vector.extract_strided_slice %270 {offsets = [0, 96], sizes = [8, 32], strides = [1, 1]} : vector<8x128xf32> to vector<8x32xf32>
    %281 = math.tanh %280 : vector<8x32xf32>
    %c0_171 = arith.constant 0 : index
    %c0_172 = arith.constant 0 : index
    %282 = vector.load %arg10[%c0_171, %c0_172] : memref<8x32xf32, #tpu.memory_space<vmem>>, vector<8x32xf32>
    %283 = arith.mulf %278, %282 : vector<8x32xf32>
    %284 = arith.mulf %277, %281 : vector<8x32xf32>
    %285 = arith.addf %283, %284 : vector<8x32xf32>
    %286 = math.tanh %285 : vector<8x32xf32>
    %287 = arith.mulf %279, %286 : vector<8x32xf32>
    %c0_173 = arith.constant 0 : index
    %c0_174 = arith.constant 0 : index
    %288 = vector.load %arg9[%c0_173, %c0_174] : memref<8x32xf32, #tpu.memory_space<vmem>>, vector<8x32xf32>
    tpu.vector_store %arg9[%c0_173, %c0_174], %287 {strides = array<i32>} : memref<8x32xf32, #tpu.memory_space<vmem>>, vector<8x32xf32>,
    %c0_175 = arith.constant 0 : index
    %c0_176 = arith.constant 0 : index
    %289 = vector.load %arg10[%c0_175, %c0_176] : memref<8x32xf32, #tpu.memory_space<vmem>>, vector<8x32xf32>
    tpu.vector_store %arg10[%c0_175, %c0_176], %285 {strides = array<i32>} : memref<8x32xf32, #tpu.memory_space<vmem>>, vector<8x32xf32>,
    %c24_177 = arith.constant 24 : index
    %c0_178 = arith.constant 0 : index
    %290 = vector.load %arg7[%c24_177, %c0_178] : memref<64x128xf32, #tpu.memory_space<vmem>>, vector<8x128xf32>
    %c0_179 = arith.constant 0 : index
    %c0_180 = arith.constant 0 : index
    %291 = vector.load %arg9[%c0_179, %c0_180] : memref<8x32xf32, #tpu.memory_space<vmem>>, vector<8x32xf32>
    %cst_181 = arith.constant dense<0.000000e+00> : vector<8x128xf32>
    %292 = tpu.matmul %291, %216, %cst_181 {dimension_numbers = #tpu.dot_dimension_numbers<[1], [0], [0], [1], [0, 0, 1, 1], [], []>} : vector<8x32xf32>, vector<32x128xf32>, vector<8x128xf32> -> vector<8x128xf32>
    %293 = arith.addf %290, %292 : vector<8x128xf32>
    %294 = vector.extract_strided_slice %293 {offsets = [0, 0], sizes = [8, 96], strides = [1, 1]} : vector<8x128xf32> to vector<8x96xf32>
    %295 = arith.negf %294 : vector<8x96xf32>
    %296 = math.exp %295 : vector<8x96xf32>
    %cst_182 = arith.constant 1.000000e+00 : f32
    %297 = vector.broadcast %cst_182 : f32 to vector<8x96xf32>
    %298 = arith.addf %297, %296 : vector<8x96xf32>
    %299 = arith.divf %297, %298 : vector<8x96xf32>
    %300 = vector.extract_strided_slice %299 {offsets = [0, 0], sizes = [8, 32], strides = [1, 1]} : vector<8x96xf32> to vector<8x32xf32>
    %301 = vector.extract_strided_slice %299 {offsets = [0, 32], sizes = [8, 32], strides = [1, 1]} : vector<8x96xf32> to vector<8x32xf32>
    %302 = vector.extract_strided_slice %299 {offsets = [0, 64], sizes = [8, 32], strides = [1, 1]} : vector<8x96xf32> to vector<8x32xf32>
    %303 = vector.extract_strided_slice %293 {offsets = [0, 96], sizes = [8, 32], strides = [1, 1]} : vector<8x128xf32> to vector<8x32xf32>
    %304 = math.tanh %303 : vector<8x32xf32>
    %c0_183 = arith.constant 0 : index
    %c0_184 = arith.constant 0 : index
    %305 = vector.load %arg10[%c0_183, %c0_184] : memref<8x32xf32, #tpu.memory_space<vmem>>, vector<8x32xf32>
    %306 = arith.mulf %301, %305 : vector<8x32xf32>
    %307 = arith.mulf %300, %304 : vector<8x32xf32>
    %308 = arith.addf %306, %307 : vector<8x32xf32>
    %309 = math.tanh %308 : vector<8x32xf32>
    %310 = arith.mulf %302, %309 : vector<8x32xf32>
    %c0_185 = arith.constant 0 : index
    %c0_186 = arith.constant 0 : index
    %311 = vector.load %arg9[%c0_185, %c0_186] : memref<8x32xf32, #tpu.memory_space<vmem>>, vector<8x32xf32>
    tpu.vector_store %arg9[%c0_185, %c0_186], %310 {strides = array<i32>} : memref<8x32xf32, #tpu.memory_space<vmem>>, vector<8x32xf32>,
    %c0_187 = arith.constant 0 : index
    %c0_188 = arith.constant 0 : index
    %312 = vector.load %arg10[%c0_187, %c0_188] : memref<8x32xf32, #tpu.memory_space<vmem>>, vector<8x32xf32>
    tpu.vector_store %arg10[%c0_187, %c0_188], %308 {strides = array<i32>} : memref<8x32xf32, #tpu.memory_space<vmem>>, vector<8x32xf32>,
    %c32_189 = arith.constant 32 : index
    %c0_190 = arith.constant 0 : index
    %313 = vector.load %arg7[%c32_189, %c0_190] : memref<64x128xf32, #tpu.memory_space<vmem>>, vector<8x128xf32>
    %c0_191 = arith.constant 0 : index
    %c0_192 = arith.constant 0 : index
    %314 = vector.load %arg9[%c0_191, %c0_192] : memref<8x32xf32, #tpu.memory_space<vmem>>, vector<8x32xf32>
    %cst_193 = arith.constant dense<0.000000e+00> : vector<8x128xf32>
    %315 = tpu.matmul %314, %216, %cst_193 {dimension_numbers = #tpu.dot_dimension_numbers<[1], [0], [0], [1], [0, 0, 1, 1], [], []>} : vector<8x32xf32>, vector<32x128xf32>, vector<8x128xf32> -> vector<8x128xf32>
    %316 = arith.addf %313, %315 : vector<8x128xf32>
    %317 = vector.extract_strided_slice %316 {offsets = [0, 0], sizes = [8, 96], strides = [1, 1]} : vector<8x128xf32> to vector<8x96xf32>
    %318 = arith.negf %317 : vector<8x96xf32>
    %319 = math.exp %318 : vector<8x96xf32>
    %cst_194 = arith.constant 1.000000e+00 : f32
    %320 = vector.broadcast %cst_194 : f32 to vector<8x96xf32>
    %321 = arith.addf %320, %319 : vector<8x96xf32>
    %322 = arith.divf %320, %321 : vector<8x96xf32>
    %323 = vector.extract_strided_slice %322 {offsets = [0, 0], sizes = [8, 32], strides = [1, 1]} : vector<8x96xf32> to vector<8x32xf32>
    %324 = vector.extract_strided_slice %322 {offsets = [0, 32], sizes = [8, 32], strides = [1, 1]} : vector<8x96xf32> to vector<8x32xf32>
    %325 = vector.extract_strided_slice %322 {offsets = [0, 64], sizes = [8, 32], strides = [1, 1]} : vector<8x96xf32> to vector<8x32xf32>
    %326 = vector.extract_strided_slice %316 {offsets = [0, 96], sizes = [8, 32], strides = [1, 1]} : vector<8x128xf32> to vector<8x32xf32>
    %327 = math.tanh %326 : vector<8x32xf32>
    %c0_195 = arith.constant 0 : index
    %c0_196 = arith.constant 0 : index
    %328 = vector.load %arg10[%c0_195, %c0_196] : memref<8x32xf32, #tpu.memory_space<vmem>>, vector<8x32xf32>
    %329 = arith.mulf %324, %328 : vector<8x32xf32>
    %330 = arith.mulf %323, %327 : vector<8x32xf32>
    %331 = arith.addf %329, %330 : vector<8x32xf32>
    %332 = math.tanh %331 : vector<8x32xf32>
    %333 = arith.mulf %325, %332 : vector<8x32xf32>
    %c0_197 = arith.constant 0 : index
    %c0_198 = arith.constant 0 : index
    %334 = vector.load %arg9[%c0_197, %c0_198] : memref<8x32xf32, #tpu.memory_space<vmem>>, vector<8x32xf32>
    tpu.vector_store %arg9[%c0_197, %c0_198], %333 {strides = array<i32>} : memref<8x32xf32, #tpu.memory_space<vmem>>, vector<8x32xf32>,
    %c0_199 = arith.constant 0 : index
    %c0_200 = arith.constant 0 : index
    %335 = vector.load %arg10[%c0_199, %c0_200] : memref<8x32xf32, #tpu.memory_space<vmem>>, vector<8x32xf32>
    tpu.vector_store %arg10[%c0_199, %c0_200], %331 {strides = array<i32>} : memref<8x32xf32, #tpu.memory_space<vmem>>, vector<8x32xf32>,
    %c40_201 = arith.constant 40 : index
    %c0_202 = arith.constant 0 : index
    %336 = vector.load %arg7[%c40_201, %c0_202] : memref<64x128xf32, #tpu.memory_space<vmem>>, vector<8x128xf32>
    %c0_203 = arith.constant 0 : index
    %c0_204 = arith.constant 0 : index
    %337 = vector.load %arg9[%c0_203, %c0_204] : memref<8x32xf32, #tpu.memory_space<vmem>>, vector<8x32xf32>
    %cst_205 = arith.constant dense<0.000000e+00> : vector<8x128xf32>
    %338 = tpu.matmul %337, %216, %cst_205 {dimension_numbers = #tpu.dot_dimension_numbers<[1], [0], [0], [1], [0, 0, 1, 1], [], []>} : vector<8x32xf32>, vector<32x128xf32>, vector<8x128xf32> -> vector<8x128xf32>
    %339 = arith.addf %336, %338 : vector<8x128xf32>
    %340 = vector.extract_strided_slice %339 {offsets = [0, 0], sizes = [8, 96], strides = [1, 1]} : vector<8x128xf32> to vector<8x96xf32>
    %341 = arith.negf %340 : vector<8x96xf32>
    %342 = math.exp %341 : vector<8x96xf32>
    %cst_206 = arith.constant 1.000000e+00 : f32
    %343 = vector.broadcast %cst_206 : f32 to vector<8x96xf32>
    %344 = arith.addf %343, %342 : vector<8x96xf32>
    %345 = arith.divf %343, %344 : vector<8x96xf32>
    %346 = vector.extract_strided_slice %345 {offsets = [0, 0], sizes = [8, 32], strides = [1, 1]} : vector<8x96xf32> to vector<8x32xf32>
    %347 = vector.extract_strided_slice %345 {offsets = [0, 32], sizes = [8, 32], strides = [1, 1]} : vector<8x96xf32> to vector<8x32xf32>
    %348 = vector.extract_strided_slice %345 {offsets = [0, 64], sizes = [8, 32], strides = [1, 1]} : vector<8x96xf32> to vector<8x32xf32>
    %349 = vector.extract_strided_slice %339 {offsets = [0, 96], sizes = [8, 32], strides = [1, 1]} : vector<8x128xf32> to vector<8x32xf32>
    %350 = math.tanh %349 : vector<8x32xf32>
    %c0_207 = arith.constant 0 : index
    %c0_208 = arith.constant 0 : index
    %351 = vector.load %arg10[%c0_207, %c0_208] : memref<8x32xf32, #tpu.memory_space<vmem>>, vector<8x32xf32>
    %352 = arith.mulf %347, %351 : vector<8x32xf32>
    %353 = arith.mulf %346, %350 : vector<8x32xf32>
    %354 = arith.addf %352, %353 : vector<8x32xf32>
    %355 = math.tanh %354 : vector<8x32xf32>
    %356 = arith.mulf %348, %355 : vector<8x32xf32>
    %c0_209 = arith.constant 0 : index
    %c0_210 = arith.constant 0 : index
    %357 = vector.load %arg9[%c0_209, %c0_210] : memref<8x32xf32, #tpu.memory_space<vmem>>, vector<8x32xf32>
    tpu.vector_store %arg9[%c0_209, %c0_210], %356 {strides = array<i32>} : memref<8x32xf32, #tpu.memory_space<vmem>>, vector<8x32xf32>,
    %c0_211 = arith.constant 0 : index
    %c0_212 = arith.constant 0 : index
    %358 = vector.load %arg10[%c0_211, %c0_212] : memref<8x32xf32, #tpu.memory_space<vmem>>, vector<8x32xf32>
    tpu.vector_store %arg10[%c0_211, %c0_212], %354 {strides = array<i32>} : memref<8x32xf32, #tpu.memory_space<vmem>>, vector<8x32xf32>,
    %c48_213 = arith.constant 48 : index
    %c0_214 = arith.constant 0 : index
    %359 = vector.load %arg7[%c48_213, %c0_214] : memref<64x128xf32, #tpu.memory_space<vmem>>, vector<8x128xf32>
    %c0_215 = arith.constant 0 : index
    %c0_216 = arith.constant 0 : index
    %360 = vector.load %arg9[%c0_215, %c0_216] : memref<8x32xf32, #tpu.memory_space<vmem>>, vector<8x32xf32>
    %cst_217 = arith.constant dense<0.000000e+00> : vector<8x128xf32>
    %361 = tpu.matmul %360, %216, %cst_217 {dimension_numbers = #tpu.dot_dimension_numbers<[1], [0], [0], [1], [0, 0, 1, 1], [], []>} : vector<8x32xf32>, vector<32x128xf32>, vector<8x128xf32> -> vector<8x128xf32>
    %362 = arith.addf %359, %361 : vector<8x128xf32>
    %363 = vector.extract_strided_slice %362 {offsets = [0, 0], sizes = [8, 96], strides = [1, 1]} : vector<8x128xf32> to vector<8x96xf32>
    %364 = arith.negf %363 : vector<8x96xf32>
    %365 = math.exp %364 : vector<8x96xf32>
    %cst_218 = arith.constant 1.000000e+00 : f32
    %366 = vector.broadcast %cst_218 : f32 to vector<8x96xf32>
    %367 = arith.addf %366, %365 : vector<8x96xf32>
    %368 = arith.divf %366, %367 : vector<8x96xf32>
    %369 = vector.extract_strided_slice %368 {offsets = [0, 0], sizes = [8, 32], strides = [1, 1]} : vector<8x96xf32> to vector<8x32xf32>
    %370 = vector.extract_strided_slice %368 {offsets = [0, 32], sizes = [8, 32], strides = [1, 1]} : vector<8x96xf32> to vector<8x32xf32>
    %371 = vector.extract_strided_slice %368 {offsets = [0, 64], sizes = [8, 32], strides = [1, 1]} : vector<8x96xf32> to vector<8x32xf32>
    %372 = vector.extract_strided_slice %362 {offsets = [0, 96], sizes = [8, 32], strides = [1, 1]} : vector<8x128xf32> to vector<8x32xf32>
    %373 = math.tanh %372 : vector<8x32xf32>
    %c0_219 = arith.constant 0 : index
    %c0_220 = arith.constant 0 : index
    %374 = vector.load %arg10[%c0_219, %c0_220] : memref<8x32xf32, #tpu.memory_space<vmem>>, vector<8x32xf32>
    %375 = arith.mulf %370, %374 : vector<8x32xf32>
    %376 = arith.mulf %369, %373 : vector<8x32xf32>
    %377 = arith.addf %375, %376 : vector<8x32xf32>
    %378 = math.tanh %377 : vector<8x32xf32>
    %379 = arith.mulf %371, %378 : vector<8x32xf32>
    %c0_221 = arith.constant 0 : index
    %c0_222 = arith.constant 0 : index
    %380 = vector.load %arg9[%c0_221, %c0_222] : memref<8x32xf32, #tpu.memory_space<vmem>>, vector<8x32xf32>
    tpu.vector_store %arg9[%c0_221, %c0_222], %379 {strides = array<i32>} : memref<8x32xf32, #tpu.memory_space<vmem>>, vector<8x32xf32>,
    %c0_223 = arith.constant 0 : index
    %c0_224 = arith.constant 0 : index
    %381 = vector.load %arg10[%c0_223, %c0_224] : memref<8x32xf32, #tpu.memory_space<vmem>>, vector<8x32xf32>
    tpu.vector_store %arg10[%c0_223, %c0_224], %377 {strides = array<i32>} : memref<8x32xf32, #tpu.memory_space<vmem>>, vector<8x32xf32>,
    %c56_225 = arith.constant 56 : index
    %c0_226 = arith.constant 0 : index
    %382 = vector.load %arg7[%c56_225, %c0_226] : memref<64x128xf32, #tpu.memory_space<vmem>>, vector<8x128xf32>
    %c0_227 = arith.constant 0 : index
    %c0_228 = arith.constant 0 : index
    %383 = vector.load %arg9[%c0_227, %c0_228] : memref<8x32xf32, #tpu.memory_space<vmem>>, vector<8x32xf32>
    %cst_229 = arith.constant dense<0.000000e+00> : vector<8x128xf32>
    %384 = tpu.matmul %383, %216, %cst_229 {dimension_numbers = #tpu.dot_dimension_numbers<[1], [0], [0], [1], [0, 0, 1, 1], [], []>} : vector<8x32xf32>, vector<32x128xf32>, vector<8x128xf32> -> vector<8x128xf32>
    %385 = arith.addf %382, %384 : vector<8x128xf32>
    %386 = vector.extract_strided_slice %385 {offsets = [0, 0], sizes = [8, 96], strides = [1, 1]} : vector<8x128xf32> to vector<8x96xf32>
    %387 = arith.negf %386 : vector<8x96xf32>
    %388 = math.exp %387 : vector<8x96xf32>
    %cst_230 = arith.constant 1.000000e+00 : f32
    %389 = vector.broadcast %cst_230 : f32 to vector<8x96xf32>
    %390 = arith.addf %389, %388 : vector<8x96xf32>
    %391 = arith.divf %389, %390 : vector<8x96xf32>
    %392 = vector.extract_strided_slice %391 {offsets = [0, 0], sizes = [8, 32], strides = [1, 1]} : vector<8x96xf32> to vector<8x32xf32>
    %393 = vector.extract_strided_slice %391 {offsets = [0, 32], sizes = [8, 32], strides = [1, 1]} : vector<8x96xf32> to vector<8x32xf32>
    %394 = vector.extract_strided_slice %391 {offsets = [0, 64], sizes = [8, 32], strides = [1, 1]} : vector<8x96xf32> to vector<8x32xf32>
    %395 = vector.extract_strided_slice %385 {offsets = [0, 96], sizes = [8, 32], strides = [1, 1]} : vector<8x128xf32> to vector<8x32xf32>
    %396 = math.tanh %395 : vector<8x32xf32>
    %c0_231 = arith.constant 0 : index
    %c0_232 = arith.constant 0 : index
    %397 = vector.load %arg10[%c0_231, %c0_232] : memref<8x32xf32, #tpu.memory_space<vmem>>, vector<8x32xf32>
    %398 = arith.mulf %393, %397 : vector<8x32xf32>
    %399 = arith.mulf %392, %396 : vector<8x32xf32>
    %400 = arith.addf %398, %399 : vector<8x32xf32>
    %401 = math.tanh %400 : vector<8x32xf32>
    %402 = arith.mulf %394, %401 : vector<8x32xf32>
    %c0_233 = arith.constant 0 : index
    %c0_234 = arith.constant 0 : index
    %403 = vector.load %arg9[%c0_233, %c0_234] : memref<8x32xf32, #tpu.memory_space<vmem>>, vector<8x32xf32>
    tpu.vector_store %arg9[%c0_233, %c0_234], %402 {strides = array<i32>} : memref<8x32xf32, #tpu.memory_space<vmem>>, vector<8x32xf32>,
    %c0_235 = arith.constant 0 : index
    %c0_236 = arith.constant 0 : index
    %404 = vector.load %arg10[%c0_235, %c0_236] : memref<8x32xf32, #tpu.memory_space<vmem>>, vector<8x32xf32>
    tpu.vector_store %arg10[%c0_235, %c0_236], %400 {strides = array<i32>} : memref<8x32xf32, #tpu.memory_space<vmem>>, vector<8x32xf32>,
    %c0_237 = arith.constant 0 : index
    %c0_238 = arith.constant 0 : index
    %405 = vector.load %arg9[%c0_237, %c0_238] : memref<8x32xf32, #tpu.memory_space<vmem>>, vector<8x32xf32>
    %c1_239 = arith.constant 1 : index
    %c0_240 = arith.constant 0 : index
    %c0_241 = arith.constant 0 : index
    %406 = vector.load %arg5[%c1_239, %c0_240, %c0_241] : memref<2x8x32xf32, #tpu.memory_space<vmem>>, vector<1x8x32xf32>
    %407 = vector.shape_cast %406 : vector<1x8x32xf32> to vector<8x32xf32>
    %408 = vector.shape_cast %405 : vector<8x32xf32> to vector<1x8x32xf32>
    tpu.vector_store %arg5[%c1_239, %c0_240, %c0_241], %408 {strides = array<i32>} : memref<2x8x32xf32, #tpu.memory_space<vmem>>, vector<1x8x32xf32>,
    %c0_242 = arith.constant 0 : index
    %c0_243 = arith.constant 0 : index
    %409 = vector.load %arg10[%c0_242, %c0_243] : memref<8x32xf32, #tpu.memory_space<vmem>>, vector<8x32xf32>
    %c1_244 = arith.constant 1 : index
    %c0_245 = arith.constant 0 : index
    %c0_246 = arith.constant 0 : index
    %410 = vector.load %arg6[%c1_244, %c0_245, %c0_246] : memref<2x8x32xf32, #tpu.memory_space<vmem>>, vector<1x8x32xf32>
    %411 = vector.shape_cast %410 : vector<1x8x32xf32> to vector<8x32xf32>
    %412 = vector.shape_cast %409 : vector<8x32xf32> to vector<1x8x32xf32>
    tpu.vector_store %arg6[%c1_244, %c0_245, %c0_246], %412 {strides = array<i32>} : memref<2x8x32xf32, #tpu.memory_space<vmem>>, vector<1x8x32xf32>,
    return
  }
  func.func @transform_0(%arg0: i32) -> (i32, i32) {
    %c0_i32 = arith.constant 0 : i32
    %c0_i32_0 = arith.constant 0 : i32
    %c0_i32_1 = arith.constant 0 : i32
    return %c0_i32, %c0_i32_0 : i32, i32
  }
  func.func @transform_1(%arg0: i32) -> (i32, i32, i32) {
    %c0_i32 = arith.constant 0 : i32
    %c0_i32_0 = arith.constant 0 : i32
    %c0_i32_1 = arith.constant 0 : i32
    %c0_i32_2 = arith.constant 0 : i32
    return %c0_i32, %c0_i32_0, %c0_i32_1 : i32, i32, i32
  }
  func.func @transform_2(%arg0: i32) -> (i32, i32, i32) {
    %c0_i32 = arith.constant 0 : i32
    %c0_i32_0 = arith.constant 0 : i32
    %c0_i32_1 = arith.constant 0 : i32
    %c0_i32_2 = arith.constant 0 : i32
    return %c0_i32, %c0_i32_0, %c0_i32_1 : i32, i32, i32
  }
  func.func @transform_3(%arg0: i32) -> (i32, i32, i32) {
    %c0_i32 = arith.constant 0 : i32
    %c0_i32_0 = arith.constant 0 : i32
    %c0_i32_1 = arith.constant 0 : i32
    %c0_i32_2 = arith.constant 0 : i32
    return %c0_i32, %c0_i32_0, %c0_i32_1 : i32, i32, i32
  }
  func.func @transform_4(%arg0: i32) -> (i32, i32, i32) {
    %c0_i32 = arith.constant 0 : i32
    %c0_i32_0 = arith.constant 0 : i32
    %c0_i32_1 = arith.constant 0 : i32
    %c0_i32_2 = arith.constant 0 : i32
    return %c0_i32, %c0_i32_0, %c0_i32_1 : i32, i32, i32
  }
  func.func @transform_5(%arg0: i32) -> (i32, i32, i32) {
    %c0_i32 = arith.constant 0 : i32
    %c0_i32_0 = arith.constant 0 : i32
    %c0_i32_1 = arith.constant 0 : i32
    %c0_i32_2 = arith.constant 0 : i32
    return %c0_i32, %c0_i32_0, %c0_i32_1 : i32, i32, i32
  }
}

</mosaic_0001>

<llo_original>
// kernel: encoder_forward_pallas.1
$region0: #{encoder_forward_pallas.1}
  #allocation0 [shape = 'u32[]', space=smem, size = 0x4, offset = 0x4, fixed_abs, tag = 'smem constant byte address 0x4 - core index']
  #allocation1 [shape = 'u32[72,128]{1,0:T(1,128)}', space=vmem, size = 0x9000, scoped, tag = 'internal scratch']
  #allocation2 [shape = 'f32[64,128]{1,0:T(8,128)}', space=vmem, size = 0x8000, scoped, tag = 'scratch operand']
  #allocation3 [shape = 'f32[64,32]{1,0:T(8,128)}', space=vmem, size = 0x8000, scoped, tag = 'scratch operand']
  #allocation4 [shape = 'f32[8,32]{1,0:T(8,128)}', space=vmem, size = 0x1000, scoped, tag = 'scratch operand']
  #allocation5 [shape = 'f32[8,32]{1,0:T(8,128)}', space=vmem, size = 0x1000, scoped, tag = 'scratch operand']
  %s0 = inlined_call_operand.vmem [shape: f32[64,128], index: 0, kind: input, shape index: {}]
  %s1 = inlined_call_operand.vmem [shape: f32[1,32,128], index: 1, kind: input, shape index: {}]
  %s2 = inlined_call_operand.vmem [shape: f32[1,1,128], index: 2, kind: input, shape index: {}]
  %s3 = inlined_call_operand.vmem [shape: f32[2,32,128], index: 3, kind: input, shape index: {}]
  %s4 = inlined_call_operand.vmem [shape: f32[2,8,32], index: 4, kind: output, shape index: {0}]
  %s5 = inlined_call_operand.vmem [shape: f32[2,8,32], index: 5, kind: output, shape index: {1}]
  %6 = xla_tuple %s4, %s5
  %s7 = sld [smem:[#allocation0]]
  $region34: #{encoder_forward_pallas.1} parent=0
    _
  %s9 = ssub.s32 1, %s7
  %s10 = scalar_select 0, %s9, %s7
  // Predicated region
  $region2: #{encoder_forward_pallas.1} parent=0 // pred_check
    _
  $region3: #{encoder_forward_pallas.1} parent=0 // pred_check_branch
    %12 = sbr.rel (0) target = $region5
  $region4: #{encoder_forward_pallas.1} parent=0 // pred_region
    _
  $region5: #{encoder_forward_pallas.1} parent=0 // pred_fallthru
    _
  // Predicated region
  $region6: #{encoder_forward_pallas.1} parent=0 // pred_check
    _
  $region7: #{encoder_forward_pallas.1} parent=0 // pred_check_branch
    %14 = sbr.rel (0) target = $region9
  $region8: #{encoder_forward_pallas.1} parent=0 // pred_region
    _
  $region9: #{encoder_forward_pallas.1} parent=0 // pred_fallthru
    _
  // Predicated region
  $region10: #{encoder_forward_pallas.1} parent=0 // pred_check
    _
  $region11: #{encoder_forward_pallas.1} parent=0 // pred_check_branch
    %16 = sbr.rel (0) target = $region13
  $region12: #{encoder_forward_pallas.1} parent=0 // pred_region
    _
  $region13: #{encoder_forward_pallas.1} parent=0 // pred_fallthru
    _
  // Predicated region
  $region14: #{encoder_forward_pallas.1} parent=0 // pred_check
    _
  $region15: #{encoder_forward_pallas.1} parent=0 // pred_check_branch
    %18 = sbr.rel (0) target = $region17
  $region16: #{encoder_forward_pallas.1} parent=0 // pred_region
    _
  $region17: #{encoder_forward_pallas.1} parent=0 // pred_fallthru
    _
  %v19 = vld [vmem:[%s3] sm:$0xff]
  %v20 = vld [vmem:[%s3 + $0x8] sm:$0xff]
  %v21 = vld [vmem:[%s3 + $0x10] sm:$0xff]
  %v22 = vld [vmem:[%s3 + $0x18] sm:$0xff]
  %vm23 = vcmask 261120
  %24 = vst.msk [vmem:[#allocation4] sm:$0xff] %vm23, 0.0
  %25 = vst.msk [vmem:[#allocation5] sm:$0xff] %vm23, 0.0
  %v26 = vld [vmem:[%s0] sm:$0xff]
  %v27 = vld [vmem:[#allocation4] sm:$0xff]
  %v29 = vsel %vm23, %v27, 0
  %31 = vmatpush.msra.mxu0 0.0
  %32 = vmatpush.msra.mxu0 0.0
  %33 = vmatpush.msra.mxu0 0.0
  %34 = vmatpush.msra.mxu0 0.0
  %35 = vmatpush.msra.mxu0 0.0
  %36 = vmatpush.msra.mxu0 0.0
  %37 = vmatpush.msra.mxu0 0.0
  %38 = vmatpush.msra.mxu0 0.0
  %39 = vmatpush.msra.mxu0 0.0
  %40 = vmatpush.msra.mxu0 0.0
  %41 = vmatpush.msra.mxu0 0.0
  %42 = vmatpush.msra.mxu0 0.0
  %43 = vmatpush.msra.mxu0 %v22
  %44 = vmatpush.msra.mxu0 %v21
  %45 = vmatpush.msra.mxu0 %v20
  %46 = vmatpush.msra.mxu0 %v19
  %47 = vmatmul.f32.gmra.mxu0 %v29
  %v48 = vpop.f32.mrf.mxu0
  %v49 = vadd.f32 0.0, %v48
  %50 = vdwg.mxu0
  %v51 = vadd.f32 %v26, %v49
  %v52 = vxor.u32 %v51, 2147483648
  %v53 = vmul.f32 %v52, 1.442695
  %v54 = vpow.pop %v53
  %v55 = vadd.f32 %v54, 1.0
  %v56 = vrcp.pop %v55
  %v57 = vmul.f32 %v55, %v56
  %v58 = vsub.f32 1.0, %v57
  %v59 = vmul.f32 %v56, %v58
  %v60 = vadd.f32 %v56, %v59
  %vm61 = vweird.f32 %v55
  %vm62 = vweird.f32 %v56
  %vm63 = vmor %vm61, %vm62
  %v64 = vsel %vm63, %v56, %v60
  %v65 = vand.u32 2147483647, %v55
  %vm66 = vcmp.eq.f32.partialorder %v65, 8.507059e+37
  %v67 = vand.u32 %v55, 2147483648
  %v68 = vor.u32 1.1754944e-38, %v67
  %v69 = vsel %vm66, %v68, %v64
  %v70 = vmul.f32 1.0, %v69
  %v71 = vtanh.pop %v51
  %v72 = vld [vmem:[#allocation5] sm:$0xff]
  %74 = vrot.lane.b32.xlu0 %v72, 32
  %v75 = vpop.permute.xlu0 %74
  %v77 = vmul.f32 %v70, %v75
  %79 = vrot.lane.b32.xlu0 %v71, 32
  %v80 = vpop.permute.xlu0 %79
  %v82 = vmul.f32 %v70, %v80
  %84 = vrot.lane.b32.xlu0 %v82, 32
  %v85 = vpop.permute.xlu0 %84
  %v87 = vadd.f32 %v77, %v85
  %v88 = vtanh.pop %v87
  %90 = vrot.lane.b32.xlu0 %v88, 32
  %v91 = vpop.permute.xlu0 %90
  %v93 = vmul.f32 %v70, %v91
  %95 = vrot.lane.b32.xlu0 %v93, 64
  %v96 = vpop.permute.xlu0 %95
  %98 = vst.msk [vmem:[#allocation4] sm:$0xff] %vm23, %v96
  %100 = vrot.lane.b32.xlu0 %v87, 96
  %v101 = vpop.permute.xlu0 %100
  %103 = vst.msk [vmem:[#allocation5] sm:$0xff] %vm23, %v101
  %104 = vst.msk [vmem:[#allocation3] sm:$0xff] %vm23, %v96
  %v105 = vld [vmem:[%s0 + $0x8] sm:$0xff]
  %v106 = vld [vmem:[#allocation4] sm:$0xff]
  %v108 = vsel %vm23, %v106, 0
  %110 = vmatpush.msra.mxu0 0.0
  %111 = vmatpush.msra.mxu0 0.0
  %112 = vmatpush.msra.mxu0 0.0
  %113 = vmatpush.msra.mxu0 0.0
  %114 = vmatpush.msra.mxu0 0.0
  %115 = vmatpush.msra.mxu0 0.0
  %116 = vmatpush.msra.mxu0 0.0
  %117 = vmatpush.msra.mxu0 0.0
  %118 = vmatpush.msra.mxu0 0.0
  %119 = vmatpush.msra.mxu0 0.0
  %120 = vmatpush.msra.mxu0 0.0
  %121 = vmatpush.msra.mxu0 0.0
  %122 = vmatpush.msra.mxu0 %v22
  %123 = vmatpush.msra.mxu0 %v21
  %124 = vmatpush.msra.mxu0 %v20
  %125 = vmatpush.msra.mxu0 %v19
  %126 = vmatmul.f32.gmra.mxu0 %v108
  %v127 = vpop.f32.mrf.mxu0
  %v128 = vadd.f32 0.0, %v127
  %129 = vdwg.mxu0
  %v130 = vadd.f32 %v105, %v128
  %v131 = vxor.u32 %v130, 2147483648
  %v132 = vmul.f32 %v131, 1.442695
  %v133 = vpow.pop %v132
  %v134 = vadd.f32 %v133, 1.0
  %v135 = vrcp.pop %v134
  %v136 = vmul.f32 %v134, %v135
  %v137 = vsub.f32 1.0, %v136
  %v138 = vmul.f32 %v135, %v137
  %v139 = vadd.f32 %v135, %v138
  %vm140 = vweird.f32 %v134
  %vm141 = vweird.f32 %v135
  %vm142 = vmor %vm140, %vm141
  %v143 = vsel %vm142, %v135, %v139
  %v144 = vand.u32 2147483647, %v134
  %vm145 = vcmp.eq.f32.partialorder %v144, 8.507059e+37
  %v146 = vand.u32 %v134, 2147483648
  %v147 = vor.u32 1.1754944e-38, %v146
  %v148 = vsel %vm145, %v147, %v143
  %v149 = vmul.f32 1.0, %v148
  %v150 = vtanh.pop %v130
  %v151 = vld [vmem:[#allocation5] sm:$0xff]
  %153 = vrot.lane.b32.xlu0 %v151, 32
  %v154 = vpop.permute.xlu0 %153
  %v156 = vmul.f32 %v149, %v154
  %158 = vrot.lane.b32.xlu0 %v150, 32
  %v159 = vpop.permute.xlu0 %158
  %v161 = vmul.f32 %v149, %v159
  %163 = vrot.lane.b32.xlu0 %v161, 32
  %v164 = vpop.permute.xlu0 %163
  %v166 = vadd.f32 %v156, %v164
  %v167 = vtanh.pop %v166
  %169 = vrot.lane.b32.xlu0 %v167, 32
  %v170 = vpop.permute.xlu0 %169
  %v172 = vmul.f32 %v149, %v170
  %174 = vrot.lane.b32.xlu0 %v172, 64
  %v175 = vpop.permute.xlu0 %174
  %177 = vst.msk [vmem:[#allocation4] sm:$0xff] %vm23, %v175
  %179 = vrot.lane.b32.xlu0 %v166, 96
  %v180 = vpop.permute.xlu0 %179
  %182 = vst.msk [vmem:[#allocation5] sm:$0xff] %vm23, %v180
  %183 = vst.msk [vmem:[#allocation3 + $0x8] sm:$0xff] %vm23, %v175
  %v184 = vld [vmem:[%s0 + $0x10] sm:$0xff]
  %v185 = vld [vmem:[#allocation4] sm:$0xff]
  %v187 = vsel %vm23, %v185, 0
  %189 = vmatpush.msra.mxu0 0.0
  %190 = vmatpush.msra.mxu0 0.0
  %191 = vmatpush.msra.mxu0 0.0
  %192 = vmatpush.msra.mxu0 0.0
  %193 = vmatpush.msra.mxu0 0.0
  %194 = vmatpush.msra.mxu0 0.0
  %195 = vmatpush.msra.mxu0 0.0
  %196 = vmatpush.msra.mxu0 0.0
  %197 = vmatpush.msra.mxu0 0.0
  %198 = vmatpush.msra.mxu0 0.0
  %199 = vmatpush.msra.mxu0 0.0
  %200 = vmatpush.msra.mxu0 0.0
  %201 = vmatpush.msra.mxu0 %v22
  %202 = vmatpush.msra.mxu0 %v21
  %203 = vmatpush.msra.mxu0 %v20
  %204 = vmatpush.msra.mxu0 %v19
  %205 = vmatmul.f32.gmra.mxu0 %v187
  %v206 = vpop.f32.mrf.mxu0
  %v207 = vadd.f32 0.0, %v206
  %208 = vdwg.mxu0
  %v209 = vadd.f32 %v184, %v207
  %v210 = vxor.u32 %v209, 2147483648
  %v211 = vmul.f32 %v210, 1.442695
  %v212 = vpow.pop %v211
  %v213 = vadd.f32 %v212, 1.0
  %v214 = vrcp.pop %v213
  %v215 = vmul.f32 %v213, %v214
  %v216 = vsub.f32 1.0, %v215
  %v217 = vmul.f32 %v214, %v216
  %v218 = vadd.f32 %v214, %v217
  %vm219 = vweird.f32 %v213
  %vm220 = vweird.f32 %v214
  %vm221 = vmor %vm219, %vm220
  %v222 = vsel %vm221, %v214, %v218
  %v223 = vand.u32 2147483647, %v213
  %vm224 = vcmp.eq.f32.partialorder %v223, 8.507059e+37
  %v225 = vand.u32 %v213, 2147483648
  %v226 = vor.u32 1.1754944e-38, %v225
  %v227 = vsel %vm224, %v226, %v222
  %v228 = vmul.f32 1.0, %v227
  %v229 = vtanh.pop %v209
  %v230 = vld [vmem:[#allocation5] sm:$0xff]
  %232 = vrot.lane.b32.xlu0 %v230, 32
  %v233 = vpop.permute.xlu0 %232
  %v235 = vmul.f32 %v228, %v233
  %237 = vrot.lane.b32.xlu0 %v229, 32
  %v238 = vpop.permute.xlu0 %237
  %v240 = vmul.f32 %v228, %v238
  %242 = vrot.lane.b32.xlu0 %v240, 32
  %v243 = vpop.permute.xlu0 %242
  %v245 = vadd.f32 %v235, %v243
  %v246 = vtanh.pop %v245
  %248 = vrot.lane.b32.xlu0 %v246, 32
  %v249 = vpop.permute.xlu0 %248
  %v251 = vmul.f32 %v228, %v249
  %253 = vrot.lane.b32.xlu0 %v251, 64
  %v254 = vpop.permute.xlu0 %253
  %256 = vst.msk [vmem:[#allocation4] sm:$0xff] %vm23, %v254
  %258 = vrot.lane.b32.xlu0 %v245, 96
  %v259 = vpop.permute.xlu0 %258
  %261 = vst.msk [vmem:[#allocation5] sm:$0xff] %vm23, %v259
  %262 = vst.msk [vmem:[#allocation3 + $0x10] sm:$0xff] %vm23, %v254
  %v263 = vld [vmem:[%s0 + $0x18] sm:$0xff]
  %v264 = vld [vmem:[#allocation4] sm:$0xff]
  %v266 = vsel %vm23, %v264, 0
  %268 = vmatpush.msra.mxu0 0.0
  %269 = vmatpush.msra.mxu0 0.0
  %270 = vmatpush.msra.mxu0 0.0
  %271 = vmatpush.msra.mxu0 0.0
  %272 = vmatpush.msra.mxu0 0.0
  %273 = vmatpush.msra.mxu0 0.0
  %274 = vmatpush.msra.mxu0 0.0
  %275 = vmatpush.msra.mxu0 0.0
  %276 = vmatpush.msra.mxu0 0.0
  %277 = vmatpush.msra.mxu0 0.0
  %278 = vmatpush.msra.mxu0 0.0
  %279 = vmatpush.msra.mxu0 0.0
  %280 = vmatpush.msra.mxu0 %v22
  %281 = vmatpush.msra.mxu0 %v21
  %282 = vmatpush.msra.mxu0 %v20
  %283 = vmatpush.msra.mxu0 %v19
  %284 = vmatmul.f32.gmra.mxu0 %v266
  %v285 = vpop.f32.mrf.mxu0
  %v286 = vadd.f32 0.0, %v285
  %287 = vdwg.mxu0
  %v288 = vadd.f32 %v263, %v286
  %v289 = vxor.u32 %v288, 2147483648
  %v290 = vmul.f32 %v289, 1.442695
  %v291 = vpow.pop %v290
  %v292 = vadd.f32 %v291, 1.0
  %v293 = vrcp.pop %v292
  %v294 = vmul.f32 %v292, %v293
  %v295 = vsub.f32 1.0, %v294
  %v296 = vmul.f32 %v293, %v295
  %v297 = vadd.f32 %v293, %v296
  %vm298 = vweird.f32 %v292
  %vm299 = vweird.f32 %v293
  %vm300 = vmor %vm298, %vm299
  %v301 = vsel %vm300, %v293, %v297
  %v302 = vand.u32 2147483647, %v292
  %vm303 = vcmp.eq.f32.partialorder %v302, 8.507059e+37
  %v304 = vand.u32 %v292, 2147483648
  %v305 = vor.u32 1.1754944e-38, %v304
  %v306 = vsel %vm303, %v305, %v301
  %v307 = vmul.f32 1.0, %v306
  %v308 = vtanh.pop %v288
  %v309 = vld [vmem:[#allocation5] sm:$0xff]
  %311 = vrot.lane.b32.xlu0 %v309, 32
  %v312 = vpop.permute.xlu0 %311
  %v314 = vmul.f32 %v307, %v312
  %316 = vrot.lane.b32.xlu0 %v308, 32
  %v317 = vpop.permute.xlu0 %316
  %v319 = vmul.f32 %v307, %v317
  %321 = vrot.lane.b32.xlu0 %v319, 32
  %v322 = vpop.permute.xlu0 %321
  %v324 = vadd.f32 %v314, %v322
  %v325 = vtanh.pop %v324
  %327 = vrot.lane.b32.xlu0 %v325, 32
  %v328 = vpop.permute.xlu0 %327
  %v330 = vmul.f32 %v307, %v328
  %332 = vrot.lane.b32.xlu0 %v330, 64
  %v333 = vpop.permute.xlu0 %332
  %335 = vst.msk [vmem:[#allocation4] sm:$0xff] %vm23, %v333
  %337 = vrot.lane.b32.xlu0 %v324, 96
  %v338 = vpop.permute.xlu0 %337
  %340 = vst.msk [vmem:[#allocation5] sm:$0xff] %vm23, %v338
  %341 = vst.msk [vmem:[#allocation3 + $0x18] sm:$0xff] %vm23, %v333
  %v342 = vld [vmem:[%s0 + $0x20] sm:$0xff]
  %v343 = vld [vmem:[#allocation4] sm:$0xff]
  %v345 = vsel %vm23, %v343, 0
  %347 = vmatpush.msra.mxu0 0.0
  %348 = vmatpush.msra.mxu0 0.0
  %349 = vmatpush.msra.mxu0 0.0
  %350 = vmatpush.msra.mxu0 0.0
  %351 = vmatpush.msra.mxu0 0.0
  %352 = vmatpush.msra.mxu0 0.0
  %353 = vmatpush.msra.mxu0 0.0
  %354 = vmatpush.msra.mxu0 0.0
  %355 = vmatpush.msra.mxu0 0.0
  %356 = vmatpush.msra.mxu0 0.0
  %357 = vmatpush.msra.mxu0 0.0
  %358 = vmatpush.msra.mxu0 0.0
  %359 = vmatpush.msra.mxu0 %v22
  %360 = vmatpush.msra.mxu0 %v21
  %361 = vmatpush.msra.mxu0 %v20
  %362 = vmatpush.msra.mxu0 %v19
  %363 = vmatmul.f32.gmra.mxu0 %v345
  %v364 = vpop.f32.mrf.mxu0
  %v365 = vadd.f32 0.0, %v364
  %366 = vdwg.mxu0
  %v367 = vadd.f32 %v342, %v365
  %v368 = vxor.u32 %v367, 2147483648
  %v369 = vmul.f32 %v368, 1.442695
  %v370 = vpow.pop %v369
  %v371 = vadd.f32 %v370, 1.0
  %v372 = vrcp.pop %v371
  %v373 = vmul.f32 %v371, %v372
  %v374 = vsub.f32 1.0, %v373
  %v375 = vmul.f32 %v372, %v374
  %v376 = vadd.f32 %v372, %v375
  %vm377 = vweird.f32 %v371
  %vm378 = vweird.f32 %v372
  %vm379 = vmor %vm377, %vm378
  %v380 = vsel %vm379, %v372, %v376
  %v381 = vand.u32 2147483647, %v371
  %vm382 = vcmp.eq.f32.partialorder %v381, 8.507059e+37
  %v383 = vand.u32 %v371, 2147483648
  %v384 = vor.u32 1.1754944e-38, %v383
  %v385 = vsel %vm382, %v384, %v380
  %v386 = vmul.f32 1.0, %v385
  %v387 = vtanh.pop %v367
  %v388 = vld [vmem:[#allocation5] sm:$0xff]
  %390 = vrot.lane.b32.xlu0 %v388, 32
  %v391 = vpop.permute.xlu0 %390
  %v393 = vmul.f32 %v386, %v391
  %395 = vrot.lane.b32.xlu0 %v387, 32
  %v396 = vpop.permute.xlu0 %395
  %v398 = vmul.f32 %v386, %v396
  %400 = vrot.lane.b32.xlu0 %v398, 32
  %v401 = vpop.permute.xlu0 %400
  %v403 = vadd.f32 %v393, %v401
  %v404 = vtanh.pop %v403
  %406 = vrot.lane.b32.xlu0 %v404, 32
  %v407 = vpop.permute.xlu0 %406
  %v409 = vmul.f32 %v386, %v407
  %411 = vrot.lane.b32.xlu0 %v409, 64
  %v412 = vpop.permute.xlu0 %411
  %414 = vst.msk [vmem:[#allocation4] sm:$0xff] %vm23, %v412
  %416 = vrot.lane.b32.xlu0 %v403, 96
  %v417 = vpop.permute.xlu0 %416
  %419 = vst.msk [vmem:[#allocation5] sm:$0xff] %vm23, %v417
  %420 = vst.msk [vmem:[#allocation3 + $0x20] sm:$0xff] %vm23, %v412
  %v421 = vld [vmem:[%s0 + $0x28] sm:$0xff]
  %v422 = vld [vmem:[#allocation4] sm:$0xff]
  %v424 = vsel %vm23, %v422, 0
  %426 = vmatpush.msra.mxu0 0.0
  %427 = vmatpush.msra.mxu0 0.0
  %428 = vmatpush.msra.mxu0 0.0
  %429 = vmatpush.msra.mxu0 0.0
  %430 = vmatpush.msra.mxu0 0.0
  %431 = vmatpush.msra.mxu0 0.0
  %432 = vmatpush.msra.mxu0 0.0
  %433 = vmatpush.msra.mxu0 0.0
  %434 = vmatpush.msra.mxu0 0.0
  %435 = vmatpush.msra.mxu0 0.0
  %436 = vmatpush.msra.mxu0 0.0
  %437 = vmatpush.msra.mxu0 0.0
  %438 = vmatpush.msra.mxu0 %v22
  %439 = vmatpush.msra.mxu0 %v21
  %440 = vmatpush.msra.mxu0 %v20
  %441 = vmatpush.msra.mxu0 %v19
  %442 = vmatmul.f32.gmra.mxu0 %v424
  %v443 = vpop.f32.mrf.mxu0
  %v444 = vadd.f32 0.0, %v443
  %445 = vdwg.mxu0
  %v446 = vadd.f32 %v421, %v444
  %v447 = vxor.u32 %v446, 2147483648
  %v448 = vmul.f32 %v447, 1.442695
  %v449 = vpow.pop %v448
  %v450 = vadd.f32 %v449, 1.0
  %v451 = vrcp.pop %v450
  %v452 = vmul.f32 %v450, %v451
  %v453 = vsub.f32 1.0, %v452
  %v454 = vmul.f32 %v451, %v453
  %v455 = vadd.f32 %v451, %v454
  %vm456 = vweird.f32 %v450
  %vm457 = vweird.f32 %v451
  %vm458 = vmor %vm456, %vm457
  %v459 = vsel %vm458, %v451, %v455
  %v460 = vand.u32 2147483647, %v450
  %vm461 = vcmp.eq.f32.partialorder %v460, 8.507059e+37
  %v462 = vand.u32 %v450, 2147483648
  %v463 = vor.u32 1.1754944e-38, %v462
  %v464 = vsel %vm461, %v463, %v459
  %v465 = vmul.f32 1.0, %v464
  %v466 = vtanh.pop %v446
  %v467 = vld [vmem:[#allocation5] sm:$0xff]
  %469 = vrot.lane.b32.xlu0 %v467, 32
  %v470 = vpop.permute.xlu0 %469
  %v472 = vmul.f32 %v465, %v470
  %474 = vrot.lane.b32.xlu0 %v466, 32
  %v475 = vpop.permute.xlu0 %474
  %v477 = vmul.f32 %v465, %v475
  %479 = vrot.lane.b32.xlu0 %v477, 32
  %v480 = vpop.permute.xlu0 %479
  %v482 = vadd.f32 %v472, %v480
  %v483 = vtanh.pop %v482
  %485 = vrot.lane.b32.xlu0 %v483, 32
  %v486 = vpop.permute.xlu0 %485
  %v488 = vmul.f32 %v465, %v486
  %490 = vrot.lane.b32.xlu0 %v488, 64
  %v491 = vpop.permute.xlu0 %490
  %493 = vst.msk [vmem:[#allocation4] sm:$0xff] %vm23, %v491
  %495 = vrot.lane.b32.xlu0 %v482, 96
  %v496 = vpop.permute.xlu0 %495
  %498 = vst.msk [vmem:[#allocation5] sm:$0xff] %vm23, %v496
  %499 = vst.msk [vmem:[#allocation3 + $0x28] sm:$0xff] %vm23, %v491
  %v500 = vld [vmem:[%s0 + $0x30] sm:$0xff]
  %v501 = vld [vmem:[#allocation4] sm:$0xff]
  %v503 = vsel %vm23, %v501, 0
  %505 = vmatpush.msra.mxu0 0.0
  %506 = vmatpush.msra.mxu0 0.0
  %507 = vmatpush.msra.mxu0 0.0
  %508 = vmatpush.msra.mxu0 0.0
  %509 = vmatpush.msra.mxu0 0.0
  %510 = vmatpush.msra.mxu0 0.0
  %511 = vmatpush.msra.mxu0 0.0
  %512 = vmatpush.msra.mxu0 0.0
  %513 = vmatpush.msra.mxu0 0.0
  %514 = vmatpush.msra.mxu0 0.0
  %515 = vmatpush.msra.mxu0 0.0
  %516 = vmatpush.msra.mxu0 0.0
  %517 = vmatpush.msra.mxu0 %v22
  %518 = vmatpush.msra.mxu0 %v21
  %519 = vmatpush.msra.mxu0 %v20
  %520 = vmatpush.msra.mxu0 %v19
  %521 = vmatmul.f32.gmra.mxu0 %v503
  %v522 = vpop.f32.mrf.mxu0
  %v523 = vadd.f32 0.0, %v522
  %524 = vdwg.mxu0
  %v525 = vadd.f32 %v500, %v523
  %v526 = vxor.u32 %v525, 2147483648
  %v527 = vmul.f32 %v526, 1.442695
  %v528 = vpow.pop %v527
  %v529 = vadd.f32 %v528, 1.0
  %v530 = vrcp.pop %v529
  %v531 = vmul.f32 %v529, %v530
  %v532 = vsub.f32 1.0, %v531
  %v533 = vmul.f32 %v530, %v532
  %v534 = vadd.f32 %v530, %v533
  %vm535 = vweird.f32 %v529
  %vm536 = vweird.f32 %v530
  %vm537 = vmor %vm535, %vm536
  %v538 = vsel %vm537, %v530, %v534
  %v539 = vand.u32 2147483647, %v529
  %vm540 = vcmp.eq.f32.partialorder %v539, 8.507059e+37
  %v541 = vand.u32 %v529, 2147483648
  %v542 = vor.u32 1.1754944e-38, %v541
  %v543 = vsel %vm540, %v542, %v538
  %v544 = vmul.f32 1.0, %v543
  %v545 = vtanh.pop %v525
  %v546 = vld [vmem:[#allocation5] sm:$0xff]
  %548 = vrot.lane.b32.xlu0 %v546, 32
  %v549 = vpop.permute.xlu0 %548
  %v551 = vmul.f32 %v544, %v549
  %553 = vrot.lane.b32.xlu0 %v545, 32
  %v554 = vpop.permute.xlu0 %553
  %v556 = vmul.f32 %v544, %v554
  %558 = vrot.lane.b32.xlu0 %v556, 32
  %v559 = vpop.permute.xlu0 %558
  %v561 = vadd.f32 %v551, %v559
  %v562 = vtanh.pop %v561
  %564 = vrot.lane.b32.xlu0 %v562, 32
  %v565 = vpop.permute.xlu0 %564
  %v567 = vmul.f32 %v544, %v565
  %569 = vrot.lane.b32.xlu0 %v567, 64
  %v570 = vpop.permute.xlu0 %569
  %572 = vst.msk [vmem:[#allocation4] sm:$0xff] %vm23, %v570
  %574 = vrot.lane.b32.xlu0 %v561, 96
  %v575 = vpop.permute.xlu0 %574
  %577 = vst.msk [vmem:[#allocation5] sm:$0xff] %vm23, %v575
  %578 = vst.msk [vmem:[#allocation3 + $0x30] sm:$0xff] %vm23, %v570
  %v579 = vld [vmem:[%s0 + $0x38] sm:$0xff]
  %v580 = vld [vmem:[#allocation4] sm:$0xff]
  %v582 = vsel %vm23, %v580, 0
  %584 = vmatpush.msra.mxu0 0.0
  %585 = vmatpush.msra.mxu0 0.0
  %586 = vmatpush.msra.mxu0 0.0
  %587 = vmatpush.msra.mxu0 0.0
  %588 = vmatpush.msra.mxu0 0.0
  %589 = vmatpush.msra.mxu0 0.0
  %590 = vmatpush.msra.mxu0 0.0
  %591 = vmatpush.msra.mxu0 0.0
  %592 = vmatpush.msra.mxu0 0.0
  %593 = vmatpush.msra.mxu0 0.0
  %594 = vmatpush.msra.mxu0 0.0
  %595 = vmatpush.msra.mxu0 0.0
  %596 = vmatpush.msra.mxu0 %v22
  %597 = vmatpush.msra.mxu0 %v21
  %598 = vmatpush.msra.mxu0 %v20
  %599 = vmatpush.msra.mxu0 %v19
  %600 = vmatmul.f32.gmra.mxu0 %v582
  %v601 = vpop.f32.mrf.mxu0
  %v602 = vadd.f32 0.0, %v601
  %603 = vdwg.mxu0
  %v604 = vadd.f32 %v579, %v602
  %v605 = vxor.u32 %v604, 2147483648
  %v606 = vmul.f32 %v605, 1.442695
  %v607 = vpow.pop %v606
  %v608 = vadd.f32 %v607, 1.0
  %v609 = vrcp.pop %v608
  %v610 = vmul.f32 %v608, %v609
  %v611 = vsub.f32 1.0, %v610
  %v612 = vmul.f32 %v609, %v611
  %v613 = vadd.f32 %v609, %v612
  %vm614 = vweird.f32 %v608
  %vm615 = vweird.f32 %v609
  %vm616 = vmor %vm614, %vm615
  %v617 = vsel %vm616, %v609, %v613
  %v618 = vand.u32 2147483647, %v608
  %vm619 = vcmp.eq.f32.partialorder %v618, 8.507059e+37
  %v620 = vand.u32 %v608, 2147483648
  %v621 = vor.u32 1.1754944e-38, %v620
  %v622 = vsel %vm619, %v621, %v617
  %v623 = vmul.f32 1.0, %v622
  %v624 = vtanh.pop %v604
  %v625 = vld [vmem:[#allocation5] sm:$0xff]
  %627 = vrot.lane.b32.xlu0 %v625, 32
  %v628 = vpop.permute.xlu0 %627
  %v630 = vmul.f32 %v623, %v628
  %632 = vrot.lane.b32.xlu0 %v624, 32
  %v633 = vpop.permute.xlu0 %632
  %v635 = vmul.f32 %v623, %v633
  %637 = vrot.lane.b32.xlu0 %v635, 32
  %v638 = vpop.permute.xlu0 %637
  %v640 = vadd.f32 %v630, %v638
  %v641 = vtanh.pop %v640
  %643 = vrot.lane.b32.xlu0 %v641, 32
  %v644 = vpop.permute.xlu0 %643
  %v646 = vmul.f32 %v623, %v644
  %648 = vrot.lane.b32.xlu0 %v646, 64
  %v649 = vpop.permute.xlu0 %648
  %651 = vst.msk [vmem:[#allocation4] sm:$0xff] %vm23, %v649
  %653 = vrot.lane.b32.xlu0 %v640, 96
  %v654 = vpop.permute.xlu0 %653
  %656 = vst.msk [vmem:[#allocation5] sm:$0xff] %vm23, %v654
  %657 = vst.msk [vmem:[#allocation3 + $0x38] sm:$0xff] %vm23, %v649
  %v658 = vld [vmem:[#allocation4] sm:$0xff]
  %659 = vst.msk [vmem:[%s4] sm:$0xff] %vm23, %v658
  %v660 = vld [vmem:[#allocation5] sm:$0xff]
  %661 = vst.msk [vmem:[%s5] sm:$0xff] %vm23, %v660
  %v662 = vld [vmem:[#allocation3] sm:$0xff]
  %v663 = vld [vmem:[#allocation3 + $0x8] sm:$0xff]
  %v664 = vld [vmem:[#allocation3 + $0x10] sm:$0xff]
  %v665 = vld [vmem:[#allocation3 + $0x18] sm:$0xff]
  %v666 = vld [vmem:[#allocation3 + $0x20] sm:$0xff]
  %v667 = vld [vmem:[#allocation3 + $0x28] sm:$0xff]
  %v668 = vld [vmem:[#allocation3 + $0x30] sm:$0xff]
  %v669 = vld [vmem:[#allocation3 + $0x38] sm:$0xff]
  %v670 = vld [vmem:[%s1] sm:$0xff]
  %v671 = vld [vmem:[%s1 + $0x8] sm:$0xff]
  %v672 = vld [vmem:[%s1 + $0x10] sm:$0xff]
  %v673 = vld [vmem:[%s1 + $0x18] sm:$0xff]
  %v674 = vld [vmem:[%s2] sm:$0x1]
  %v676 = vperm.slane %v674, 0
  %v679 = vsel %vm23, %v662, 0
  %v682 = vsel %vm23, %v663, 0
  %v685 = vsel %vm23, %v664, 0
  %v688 = vsel %vm23, %v665, 0
  %v691 = vsel %vm23, %v666, 0
  %v694 = vsel %vm23, %v667, 0
  %v697 = vsel %vm23, %v668, 0
  %v700 = vsel %vm23, %v669, 0
  %702 = vmatpush.msra.mxu0 0.0
  %703 = vmatpush.msra.mxu0 0.0
  %704 = vmatpush.msra.mxu0 0.0
  %705 = vmatpush.msra.mxu0 0.0
  %706 = vmatpush.msra.mxu0 0.0
  %707 = vmatpush.msra.mxu0 0.0
  %708 = vmatpush.msra.mxu0 0.0
  %709 = vmatpush.msra.mxu0 0.0
  %710 = vmatpush.msra.mxu0 0.0
  %711 = vmatpush.msra.mxu0 0.0
  %712 = vmatpush.msra.mxu0 0.0
  %713 = vmatpush.msra.mxu0 0.0
  %714 = vmatpush.msra.mxu0 %v673
  %715 = vmatpush.msra.mxu0 %v672
  %716 = vmatpush.msra.mxu0 %v671
  %717 = vmatpush.msra.mxu0 %v670
  %718 = vmatmul.f32.gmra.mxu0 %v679
  %v719 = vpop.f32.mrf.mxu0
  %v720 = vadd.f32 %v676, %v719
  %721 = vmatmul.f32.gmra.mxu0 %v682
  %v722 = vpop.f32.mrf.mxu0
  %v723 = vadd.f32 %v676, %v722
  %724 = vmatmul.f32.gmra.mxu0 %v685
  %v725 = vpop.f32.mrf.mxu0
  %v726 = vadd.f32 %v676, %v725
  %727 = vmatmul.f32.gmra.mxu0 %v688
  %v728 = vpop.f32.mrf.mxu0
  %v729 = vadd.f32 %v676, %v728
  %730 = vmatmul.f32.gmra.mxu0 %v691
  %v731 = vpop.f32.mrf.mxu0
  %v732 = vadd.f32 %v676, %v731
  %733 = vmatmul.f32.gmra.mxu0 %v694
  %v734 = vpop.f32.mrf.mxu0
  %v735 = vadd.f32 %v676, %v734
  %736 = vmatmul.f32.gmra.mxu0 %v697
  %v737 = vpop.f32.mrf.mxu0
  %v738 = vadd.f32 %v676, %v737
  %739 = vmatmul.f32.gmra.mxu0 %v700
  %v740 = vpop.f32.mrf.mxu0
  %v741 = vadd.f32 %v676, %v740
  %742 = vdwg.mxu0
  %743 = vst [vmem:[#allocation2] sm:$0xff] %v720
  %744 = vst [vmem:[#allocation2 + $0x8] sm:$0xff] %v723
  %745 = vst [vmem:[#allocation2 + $0x10] sm:$0xff] %v726
  %746 = vst [vmem:[#allocation2 + $0x18] sm:$0xff] %v729
  %747 = vst [vmem:[#allocation2 + $0x20] sm:$0xff] %v732
  %748 = vst [vmem:[#allocation2 + $0x28] sm:$0xff] %v735
  %749 = vst [vmem:[#allocation2 + $0x30] sm:$0xff] %v738
  %750 = vst [vmem:[#allocation2 + $0x38] sm:$0xff] %v741
  %s751 = scalar_lea.vmem %s3, 32
  %v752 = vld [vmem:[%s751] sm:$0xff]
  %v753 = vld [vmem:[%s751 + $0x8] sm:$0xff]
  %v754 = vld [vmem:[%s751 + $0x10] sm:$0xff]
  %v755 = vld [vmem:[%s751 + $0x18] sm:$0xff]
  %756 = vst.msk [vmem:[#allocation4] sm:$0xff] %vm23, 0.0
  %757 = vst.msk [vmem:[#allocation5] sm:$0xff] %vm23, 0.0
  %v758 = vld [vmem:[#allocation2] sm:$0xff]
  %v759 = vld [vmem:[#allocation4] sm:$0xff]
  %v761 = vsel %vm23, %v759, 0
  %763 = vmatpush.msra.mxu0 0.0
  %764 = vmatpush.msra.mxu0 0.0
  %765 = vmatpush.msra.mxu0 0.0
  %766 = vmatpush.msra.mxu0 0.0
  %767 = vmatpush.msra.mxu0 0.0
  %768 = vmatpush.msra.mxu0 0.0
  %769 = vmatpush.msra.mxu0 0.0
  %770 = vmatpush.msra.mxu0 0.0
  %771 = vmatpush.msra.mxu0 0.0
  %772 = vmatpush.msra.mxu0 0.0
  %773 = vmatpush.msra.mxu0 0.0
  %774 = vmatpush.msra.mxu0 0.0
  %775 = vmatpush.msra.mxu0 %v755
  %776 = vmatpush.msra.mxu0 %v754
  %777 = vmatpush.msra.mxu0 %v753
  %778 = vmatpush.msra.mxu0 %v752
  %779 = vmatmul.f32.gmra.mxu0 %v761
  %v780 = vpop.f32.mrf.mxu0
  %v781 = vadd.f32 0.0, %v780
  %782 = vdwg.mxu0
  %v783 = vadd.f32 %v758, %v781
  %v784 = vxor.u32 %v783, 2147483648
  %v785 = vmul.f32 %v784, 1.442695
  %v786 = vpow.pop %v785
  %v787 = vadd.f32 %v786, 1.0
  %v788 = vrcp.pop %v787
  %v789 = vmul.f32 %v787, %v788
  %v790 = vsub.f32 1.0, %v789
  %v791 = vmul.f32 %v788, %v790
  %v792 = vadd.f32 %v788, %v791
  %vm793 = vweird.f32 %v787
  %vm794 = vweird.f32 %v788
  %vm795 = vmor %vm793, %vm794
  %v796 = vsel %vm795, %v788, %v792
  %v797 = vand.u32 2147483647, %v787
  %vm798 = vcmp.eq.f32.partialorder %v797, 8.507059e+37
  %v799 = vand.u32 %v787, 2147483648
  %v800 = vor.u32 1.1754944e-38, %v799
  %v801 = vsel %vm798, %v800, %v796
  %v802 = vmul.f32 1.0, %v801
  %v803 = vtanh.pop %v783
  %v804 = vld [vmem:[#allocation5] sm:$0xff]
  %806 = vrot.lane.b32.xlu0 %v804, 32
  %v807 = vpop.permute.xlu0 %806
  %v809 = vmul.f32 %v802, %v807
  %811 = vrot.lane.b32.xlu0 %v803, 32
  %v812 = vpop.permute.xlu0 %811
  %v814 = vmul.f32 %v802, %v812
  %816 = vrot.lane.b32.xlu0 %v814, 32
  %v817 = vpop.permute.xlu0 %816
  %v819 = vadd.f32 %v809, %v817
  %v820 = vtanh.pop %v819
  %822 = vrot.lane.b32.xlu0 %v820, 32
  %v823 = vpop.permute.xlu0 %822
  %v825 = vmul.f32 %v802, %v823
  %827 = vrot.lane.b32.xlu0 %v825, 64
  %v828 = vpop.permute.xlu0 %827
  %830 = vst.msk [vmem:[#allocation4] sm:$0xff] %vm23, %v828
  %832 = vrot.lane.b32.xlu0 %v819, 96
  %v833 = vpop.permute.xlu0 %832
  %835 = vst.msk [vmem:[#allocation5] sm:$0xff] %vm23, %v833
  %v836 = vld [vmem:[#allocation2 + $0x8] sm:$0xff]
  %v837 = vld [vmem:[#allocation4] sm:$0xff]
  %v839 = vsel %vm23, %v837, 0
  %841 = vmatpush.msra.mxu0 0.0
  %842 = vmatpush.msra.mxu0 0.0
  %843 = vmatpush.msra.mxu0 0.0
  %844 = vmatpush.msra.mxu0 0.0
  %845 = vmatpush.msra.mxu0 0.0
  %846 = vmatpush.msra.mxu0 0.0
  %847 = vmatpush.msra.mxu0 0.0
  %848 = vmatpush.msra.mxu0 0.0
  %849 = vmatpush.msra.mxu0 0.0
  %850 = vmatpush.msra.mxu0 0.0
  %851 = vmatpush.msra.mxu0 0.0
  %852 = vmatpush.msra.mxu0 0.0
  %853 = vmatpush.msra.mxu0 %v755
  %854 = vmatpush.msra.mxu0 %v754
  %855 = vmatpush.msra.mxu0 %v753
  %856 = vmatpush.msra.mxu0 %v752
  %857 = vmatmul.f32.gmra.mxu0 %v839
  %v858 = vpop.f32.mrf.mxu0
  %v859 = vadd.f32 0.0, %v858
  %860 = vdwg.mxu0
  %v861 = vadd.f32 %v836, %v859
  %v862 = vxor.u32 %v861, 2147483648
  %v863 = vmul.f32 %v862, 1.442695
  %v864 = vpow.pop %v863
  %v865 = vadd.f32 %v864, 1.0
  %v866 = vrcp.pop %v865
  %v867 = vmul.f32 %v865, %v866
  %v868 = vsub.f32 1.0, %v867
  %v869 = vmul.f32 %v866, %v868
  %v870 = vadd.f32 %v866, %v869
  %vm871 = vweird.f32 %v865
  %vm872 = vweird.f32 %v866
  %vm873 = vmor %vm871, %vm872
  %v874 = vsel %vm873, %v866, %v870
  %v875 = vand.u32 2147483647, %v865
  %vm876 = vcmp.eq.f32.partialorder %v875, 8.507059e+37
  %v877 = vand.u32 %v865, 2147483648
  %v878 = vor.u32 1.1754944e-38, %v877
  %v879 = vsel %vm876, %v878, %v874
  %v880 = vmul.f32 1.0, %v879
  %v881 = vtanh.pop %v861
  %v882 = vld [vmem:[#allocation5] sm:$0xff]
  %884 = vrot.lane.b32.xlu0 %v882, 32
  %v885 = vpop.permute.xlu0 %884
  %v887 = vmul.f32 %v880, %v885
  %889 = vrot.lane.b32.xlu0 %v881, 32
  %v890 = vpop.permute.xlu0 %889
  %v892 = vmul.f32 %v880, %v890
  %894 = vrot.lane.b32.xlu0 %v892, 32
  %v895 = vpop.permute.xlu0 %894
  %v897 = vadd.f32 %v887, %v895
  %v898 = vtanh.pop %v897
  %900 = vrot.lane.b32.xlu0 %v898, 32
  %v901 = vpop.permute.xlu0 %900
  %v903 = vmul.f32 %v880, %v901
  %905 = vrot.lane.b32.xlu0 %v903, 64
  %v906 = vpop.permute.xlu0 %905
  %908 = vst.msk [vmem:[#allocation4] sm:$0xff] %vm23, %v906
  %910 = vrot.lane.b32.xlu0 %v897, 96
  %v911 = vpop.permute.xlu0 %910
  %913 = vst.msk [vmem:[#allocation5] sm:$0xff] %vm23, %v911
  %v914 = vld [vmem:[#allocation2 + $0x10] sm:$0xff]
  %v915 = vld [vmem:[#allocation4] sm:$0xff]
  %v917 = vsel %vm23, %v915, 0
  %919 = vmatpush.msra.mxu0 0.0
  %920 = vmatpush.msra.mxu0 0.0
  %921 = vmatpush.msra.mxu0 0.0
  %922 = vmatpush.msra.mxu0 0.0
  %923 = vmatpush.msra.mxu0 0.0
  %924 = vmatpush.msra.mxu0 0.0
  %925 = vmatpush.msra.mxu0 0.0
  %926 = vmatpush.msra.mxu0 0.0
  %927 = vmatpush.msra.mxu0 0.0
  %928 = vmatpush.msra.mxu0 0.0
  %929 = vmatpush.msra.mxu0 0.0
  %930 = vmatpush.msra.mxu0 0.0
  %931 = vmatpush.msra.mxu0 %v755
  %932 = vmatpush.msra.mxu0 %v754
  %933 = vmatpush.msra.mxu0 %v753
  %934 = vmatpush.msra.mxu0 %v752
  %935 = vmatmul.f32.gmra.mxu0 %v917
  %v936 = vpop.f32.mrf.mxu0
  %v937 = vadd.f32 0.0, %v936
  %938 = vdwg.mxu0
  %v939 = vadd.f32 %v914, %v937
  %v940 = vxor.u32 %v939, 2147483648
  %v941 = vmul.f32 %v940, 1.442695
  %v942 = vpow.pop %v941
  %v943 = vadd.f32 %v942, 1.0
  %v944 = vrcp.pop %v943
  %v945 = vmul.f32 %v943, %v944
  %v946 = vsub.f32 1.0, %v945
  %v947 = vmul.f32 %v944, %v946
  %v948 = vadd.f32 %v944, %v947
  %vm949 = vweird.f32 %v943
  %vm950 = vweird.f32 %v944
  %vm951 = vmor %vm949, %vm950
  %v952 = vsel %vm951, %v944, %v948
  %v953 = vand.u32 2147483647, %v943
  %vm954 = vcmp.eq.f32.partialorder %v953, 8.507059e+37
  %v955 = vand.u32 %v943, 2147483648
  %v956 = vor.u32 1.1754944e-38, %v955
  %v957 = vsel %vm954, %v956, %v952
  %v958 = vmul.f32 1.0, %v957
  %v959 = vtanh.pop %v939
  %v960 = vld [vmem:[#allocation5] sm:$0xff]
  %962 = vrot.lane.b32.xlu0 %v960, 32
  %v963 = vpop.permute.xlu0 %962
  %v965 = vmul.f32 %v958, %v963
  %967 = vrot.lane.b32.xlu0 %v959, 32
  %v968 = vpop.permute.xlu0 %967
  %v970 = vmul.f32 %v958, %v968
  %972 = vrot.lane.b32.xlu0 %v970, 32
  %v973 = vpop.permute.xlu0 %972
  %v975 = vadd.f32 %v965, %v973
  %v976 = vtanh.pop %v975
  %978 = vrot.lane.b32.xlu0 %v976, 32
  %v979 = vpop.permute.xlu0 %978
  %v981 = vmul.f32 %v958, %v979
  %983 = vrot.lane.b32.xlu0 %v981, 64
  %v984 = vpop.permute.xlu0 %983
  %986 = vst.msk [vmem:[#allocation4] sm:$0xff] %vm23, %v984
  %988 = vrot.lane.b32.xlu0 %v975, 96
  %v989 = vpop.permute.xlu0 %988
  %991 = vst.msk [vmem:[#allocation5] sm:$0xff] %vm23, %v989
  %v992 = vld [vmem:[#allocation2 + $0x18] sm:$0xff]
  %v993 = vld [vmem:[#allocation4] sm:$0xff]
  %v995 = vsel %vm23, %v993, 0
  %997 = vmatpush.msra.mxu0 0.0
  %998 = vmatpush.msra.mxu0 0.0
  %999 = vmatpush.msra.mxu0 0.0
  %1000 = vmatpush.msra.mxu0 0.0
  %1001 = vmatpush.msra.mxu0 0.0
  %1002 = vmatpush.msra.mxu0 0.0
  %1003 = vmatpush.msra.mxu0 0.0
  %1004 = vmatpush.msra.mxu0 0.0
  %1005 = vmatpush.msra.mxu0 0.0
  %1006 = vmatpush.msra.mxu0 0.0
  %1007 = vmatpush.msra.mxu0 0.0
  %1008 = vmatpush.msra.mxu0 0.0
  %1009 = vmatpush.msra.mxu0 %v755
  %1010 = vmatpush.msra.mxu0 %v754
  %1011 = vmatpush.msra.mxu0 %v753
  %1012 = vmatpush.msra.mxu0 %v752
  %1013 = vmatmul.f32.gmra.mxu0 %v995
  %v1014 = vpop.f32.mrf.mxu0
  %v1015 = vadd.f32 0.0, %v1014
  %1016 = vdwg.mxu0
  %v1017 = vadd.f32 %v992, %v1015
  %v1018 = vxor.u32 %v1017, 2147483648
  %v1019 = vmul.f32 %v1018, 1.442695
  %v1020 = vpow.pop %v1019
  %v1021 = vadd.f32 %v1020, 1.0
  %v1022 = vrcp.pop %v1021
  %v1023 = vmul.f32 %v1021, %v1022
  %v1024 = vsub.f32 1.0, %v1023
  %v1025 = vmul.f32 %v1022, %v1024
  %v1026 = vadd.f32 %v1022, %v1025
  %vm1027 = vweird.f32 %v1021
  %vm1028 = vweird.f32 %v1022
  %vm1029 = vmor %vm1027, %vm1028
  %v1030 = vsel %vm1029, %v1022, %v1026
  %v1031 = vand.u32 2147483647, %v1021
  %vm1032 = vcmp.eq.f32.partialorder %v1031, 8.507059e+37
  %v1033 = vand.u32 %v1021, 2147483648
  %v1034 = vor.u32 1.1754944e-38, %v1033
  %v1035 = vsel %vm1032, %v1034, %v1030
  %v1036 = vmul.f32 1.0, %v1035
  %v1037 = vtanh.pop %v1017
  %v1038 = vld [vmem:[#allocation5] sm:$0xff]
  %1040 = vrot.lane.b32.xlu0 %v1038, 32
  %v1041 = vpop.permute.xlu0 %1040
  %v1043 = vmul.f32 %v1036, %v1041
  %1045 = vrot.lane.b32.xlu0 %v1037, 32
  %v1046 = vpop.permute.xlu0 %1045
  %v1048 = vmul.f32 %v1036, %v1046
  %1050 = vrot.lane.b32.xlu0 %v1048, 32
  %v1051 = vpop.permute.xlu0 %1050
  %v1053 = vadd.f32 %v1043, %v1051
  %v1054 = vtanh.pop %v1053
  %1056 = vrot.lane.b32.xlu0 %v1054, 32
  %v1057 = vpop.permute.xlu0 %1056
  %v1059 = vmul.f32 %v1036, %v1057
  %1061 = vrot.lane.b32.xlu0 %v1059, 64
  %v1062 = vpop.permute.xlu0 %1061
  %1064 = vst.msk [vmem:[#allocation4] sm:$0xff] %vm23, %v1062
  %1066 = vrot.lane.b32.xlu0 %v1053, 96
  %v1067 = vpop.permute.xlu0 %1066
  %1069 = vst.msk [vmem:[#allocation5] sm:$0xff] %vm23, %v1067
  %v1070 = vld [vmem:[#allocation2 + $0x20] sm:$0xff]
  %v1071 = vld [vmem:[#allocation4] sm:$0xff]
  %v1073 = vsel %vm23, %v1071, 0
  %1075 = vmatpush.msra.mxu0 0.0
  %1076 = vmatpush.msra.mxu0 0.0
  %1077 = vmatpush.msra.mxu0 0.0
  %1078 = vmatpush.msra.mxu0 0.0
  %1079 = vmatpush.msra.mxu0 0.0
  %1080 = vmatpush.msra.mxu0 0.0
  %1081 = vmatpush.msra.mxu0 0.0
  %1082 = vmatpush.msra.mxu0 0.0
  %1083 = vmatpush.msra.mxu0 0.0
  %1084 = vmatpush.msra.mxu0 0.0
  %1085 = vmatpush.msra.mxu0 0.0
  %1086 = vmatpush.msra.mxu0 0.0
  %1087 = vmatpush.msra.mxu0 %v755
  %1088 = vmatpush.msra.mxu0 %v754
  %1089 = vmatpush.msra.mxu0 %v753
  %1090 = vmatpush.msra.mxu0 %v752
  %1091 = vmatmul.f32.gmra.mxu0 %v1073
  %v1092 = vpop.f32.mrf.mxu0
  %v1093 = vadd.f32 0.0, %v1092
  %1094 = vdwg.mxu0
  %v1095 = vadd.f32 %v1070, %v1093
  %v1096 = vxor.u32 %v1095, 2147483648
  %v1097 = vmul.f32 %v1096, 1.442695
  %v1098 = vpow.pop %v1097
  %v1099 = vadd.f32 %v1098, 1.0
  %v1100 = vrcp.pop %v1099
  %v1101 = vmul.f32 %v1099, %v1100
  %v1102 = vsub.f32 1.0, %v1101
  %v1103 = vmul.f32 %v1100, %v1102
  %v1104 = vadd.f32 %v1100, %v1103
  %vm1105 = vweird.f32 %v1099
  %vm1106 = vweird.f32 %v1100
  %vm1107 = vmor %vm1105, %vm1106
  %v1108 = vsel %vm1107, %v1100, %v1104
  %v1109 = vand.u32 2147483647, %v1099
  %vm1110 = vcmp.eq.f32.partialorder %v1109, 8.507059e+37
  %v1111 = vand.u32 %v1099, 2147483648
  %v1112 = vor.u32 1.1754944e-38, %v1111
  %v1113 = vsel %vm1110, %v1112, %v1108
  %v1114 = vmul.f32 1.0, %v1113
  %v1115 = vtanh.pop %v1095
  %v1116 = vld [vmem:[#allocation5] sm:$0xff]
  %1118 = vrot.lane.b32.xlu0 %v1116, 32
  %v1119 = vpop.permute.xlu0 %1118
  %v1121 = vmul.f32 %v1114, %v1119
  %1123 = vrot.lane.b32.xlu0 %v1115, 32
  %v1124 = vpop.permute.xlu0 %1123
  %v1126 = vmul.f32 %v1114, %v1124
  %1128 = vrot.lane.b32.xlu0 %v1126, 32
  %v1129 = vpop.permute.xlu0 %1128
  %v1131 = vadd.f32 %v1121, %v1129
  %v1132 = vtanh.pop %v1131
  %1134 = vrot.lane.b32.xlu0 %v1132, 32
  %v1135 = vpop.permute.xlu0 %1134
  %v1137 = vmul.f32 %v1114, %v1135
  %1139 = vrot.lane.b32.xlu0 %v1137, 64
  %v1140 = vpop.permute.xlu0 %1139
  %1142 = vst.msk [vmem:[#allocation4] sm:$0xff] %vm23, %v1140
  %1144 = vrot.lane.b32.xlu0 %v1131, 96
  %v1145 = vpop.permute.xlu0 %1144
  %1147 = vst.msk [vmem:[#allocation5] sm:$0xff] %vm23, %v1145
  %v1148 = vld [vmem:[#allocation2 + $0x28] sm:$0xff]
  %v1149 = vld [vmem:[#allocation4] sm:$0xff]
  %v1151 = vsel %vm23, %v1149, 0
  %1153 = vmatpush.msra.mxu0 0.0
  %1154 = vmatpush.msra.mxu0 0.0
  %1155 = vmatpush.msra.mxu0 0.0
  %1156 = vmatpush.msra.mxu0 0.0
  %1157 = vmatpush.msra.mxu0 0.0
  %1158 = vmatpush.msra.mxu0 0.0
  %1159 = vmatpush.msra.mxu0 0.0
  %1160 = vmatpush.msra.mxu0 0.0
  %1161 = vmatpush.msra.mxu0 0.0
  %1162 = vmatpush.msra.mxu0 0.0
  %1163 = vmatpush.msra.mxu0 0.0
  %1164 = vmatpush.msra.mxu0 0.0
  %1165 = vmatpush.msra.mxu0 %v755
  %1166 = vmatpush.msra.mxu0 %v754
  %1167 = vmatpush.msra.mxu0 %v753
  %1168 = vmatpush.msra.mxu0 %v752
  %1169 = vmatmul.f32.gmra.mxu0 %v1151
  %v1170 = vpop.f32.mrf.mxu0
  %v1171 = vadd.f32 0.0, %v1170
  %1172 = vdwg.mxu0
  %v1173 = vadd.f32 %v1148, %v1171
  %v1174 = vxor.u32 %v1173, 2147483648
  %v1175 = vmul.f32 %v1174, 1.442695
  %v1176 = vpow.pop %v1175
  %v1177 = vadd.f32 %v1176, 1.0
  %v1178 = vrcp.pop %v1177
  %v1179 = vmul.f32 %v1177, %v1178
  %v1180 = vsub.f32 1.0, %v1179
  %v1181 = vmul.f32 %v1178, %v1180
  %v1182 = vadd.f32 %v1178, %v1181
  %vm1183 = vweird.f32 %v1177
  %vm1184 = vweird.f32 %v1178
  %vm1185 = vmor %vm1183, %vm1184
  %v1186 = vsel %vm1185, %v1178, %v1182
  %v1187 = vand.u32 2147483647, %v1177
  %vm1188 = vcmp.eq.f32.partialorder %v1187, 8.507059e+37
  %v1189 = vand.u32 %v1177, 2147483648
  %v1190 = vor.u32 1.1754944e-38, %v1189
  %v1191 = vsel %vm1188, %v1190, %v1186
  %v1192 = vmul.f32 1.0, %v1191
  %v1193 = vtanh.pop %v1173
  %v1194 = vld [vmem:[#allocation5] sm:$0xff]
  %1196 = vrot.lane.b32.xlu0 %v1194, 32
  %v1197 = vpop.permute.xlu0 %1196
  %v1199 = vmul.f32 %v1192, %v1197
  %1201 = vrot.lane.b32.xlu0 %v1193, 32
  %v1202 = vpop.permute.xlu0 %1201
  %v1204 = vmul.f32 %v1192, %v1202
  %1206 = vrot.lane.b32.xlu0 %v1204, 32
  %v1207 = vpop.permute.xlu0 %1206
  %v1209 = vadd.f32 %v1199, %v1207
  %v1210 = vtanh.pop %v1209
  %1212 = vrot.lane.b32.xlu0 %v1210, 32
  %v1213 = vpop.permute.xlu0 %1212
  %v1215 = vmul.f32 %v1192, %v1213
  %1217 = vrot.lane.b32.xlu0 %v1215, 64
  %v1218 = vpop.permute.xlu0 %1217
  %1220 = vst.msk [vmem:[#allocation4] sm:$0xff] %vm23, %v1218
  %1222 = vrot.lane.b32.xlu0 %v1209, 96
  %v1223 = vpop.permute.xlu0 %1222
  %1225 = vst.msk [vmem:[#allocation5] sm:$0xff] %vm23, %v1223
  %v1226 = vld [vmem:[#allocation2 + $0x30] sm:$0xff]
  %v1227 = vld [vmem:[#allocation4] sm:$0xff]
  %v1229 = vsel %vm23, %v1227, 0
  %1231 = vmatpush.msra.mxu0 0.0
  %1232 = vmatpush.msra.mxu0 0.0
  %1233 = vmatpush.msra.mxu0 0.0
  %1234 = vmatpush.msra.mxu0 0.0
  %1235 = vmatpush.msra.mxu0 0.0
  %1236 = vmatpush.msra.mxu0 0.0
  %1237 = vmatpush.msra.mxu0 0.0
  %1238 = vmatpush.msra.mxu0 0.0
  %1239 = vmatpush.msra.mxu0 0.0
  %1240 = vmatpush.msra.mxu0 0.0
  %1241 = vmatpush.msra.mxu0 0.0
  %1242 = vmatpush.msra.mxu0 0.0
  %1243 = vmatpush.msra.mxu0 %v755
  %1244 = vmatpush.msra.mxu0 %v754
  %1245 = vmatpush.msra.mxu0 %v753
  %1246 = vmatpush.msra.mxu0 %v752
  %1247 = vmatmul.f32.gmra.mxu0 %v1229
  %v1248 = vpop.f32.mrf.mxu0
  %v1249 = vadd.f32 0.0, %v1248
  %1250 = vdwg.mxu0
  %v1251 = vadd.f32 %v1226, %v1249
  %v1252 = vxor.u32 %v1251, 2147483648
  %v1253 = vmul.f32 %v1252, 1.442695
  %v1254 = vpow.pop %v1253
  %v1255 = vadd.f32 %v1254, 1.0
  %v1256 = vrcp.pop %v1255
  %v1257 = vmul.f32 %v1255, %v1256
  %v1258 = vsub.f32 1.0, %v1257
  %v1259 = vmul.f32 %v1256, %v1258
  %v1260 = vadd.f32 %v1256, %v1259
  %vm1261 = vweird.f32 %v1255
  %vm1262 = vweird.f32 %v1256
  %vm1263 = vmor %vm1261, %vm1262
  %v1264 = vsel %vm1263, %v1256, %v1260
  %v1265 = vand.u32 2147483647, %v1255
  %vm1266 = vcmp.eq.f32.partialorder %v1265, 8.507059e+37
  %v1267 = vand.u32 %v1255, 2147483648
  %v1268 = vor.u32 1.1754944e-38, %v1267
  %v1269 = vsel %vm1266, %v1268, %v1264
  %v1270 = vmul.f32 1.0, %v1269
  %v1271 = vtanh.pop %v1251
  %v1272 = vld [vmem:[#allocation5] sm:$0xff]
  %1274 = vrot.lane.b32.xlu0 %v1272, 32
  %v1275 = vpop.permute.xlu0 %1274
  %v1277 = vmul.f32 %v1270, %v1275
  %1279 = vrot.lane.b32.xlu0 %v1271, 32
  %v1280 = vpop.permute.xlu0 %1279
  %v1282 = vmul.f32 %v1270, %v1280
  %1284 = vrot.lane.b32.xlu0 %v1282, 32
  %v1285 = vpop.permute.xlu0 %1284
  %v1287 = vadd.f32 %v1277, %v1285
  %v1288 = vtanh.pop %v1287
  %1290 = vrot.lane.b32.xlu0 %v1288, 32
  %v1291 = vpop.permute.xlu0 %1290
  %v1293 = vmul.f32 %v1270, %v1291
  %1295 = vrot.lane.b32.xlu0 %v1293, 64
  %v1296 = vpop.permute.xlu0 %1295
  %1298 = vst.msk [vmem:[#allocation4] sm:$0xff] %vm23, %v1296
  %1300 = vrot.lane.b32.xlu0 %v1287, 96
  %v1301 = vpop.permute.xlu0 %1300
  %1303 = vst.msk [vmem:[#allocation5] sm:$0xff] %vm23, %v1301
  %v1304 = vld [vmem:[#allocation2 + $0x38] sm:$0xff]
  %v1305 = vld [vmem:[#allocation4] sm:$0xff]
  %v1307 = vsel %vm23, %v1305, 0
  %1309 = vmatpush.msra.mxu0 0.0
  %1310 = vmatpush.msra.mxu0 0.0
  %1311 = vmatpush.msra.mxu0 0.0
  %1312 = vmatpush.msra.mxu0 0.0
  %1313 = vmatpush.msra.mxu0 0.0
  %1314 = vmatpush.msra.mxu0 0.0
  %1315 = vmatpush.msra.mxu0 0.0
  %1316 = vmatpush.msra.mxu0 0.0
  %1317 = vmatpush.msra.mxu0 0.0
  %1318 = vmatpush.msra.mxu0 0.0
  %1319 = vmatpush.msra.mxu0 0.0
  %1320 = vmatpush.msra.mxu0 0.0
  %1321 = vmatpush.msra.mxu0 %v755
  %1322 = vmatpush.msra.mxu0 %v754
  %1323 = vmatpush.msra.mxu0 %v753
  %1324 = vmatpush.msra.mxu0 %v752
  %1325 = vmatmul.f32.gmra.mxu0 %v1307
  %v1326 = vpop.f32.mrf.mxu0
  %v1327 = vadd.f32 0.0, %v1326
  %1328 = vdwg.mxu0
  %v1329 = vadd.f32 %v1304, %v1327
  %v1330 = vxor.u32 %v1329, 2147483648
  %v1331 = vmul.f32 %v1330, 1.442695
  %v1332 = vpow.pop %v1331
  %v1333 = vadd.f32 %v1332, 1.0
  %v1334 = vrcp.pop %v1333
  %v1335 = vmul.f32 %v1333, %v1334
  %v1336 = vsub.f32 1.0, %v1335
  %v1337 = vmul.f32 %v1334, %v1336
  %v1338 = vadd.f32 %v1334, %v1337
  %vm1339 = vweird.f32 %v1333
  %vm1340 = vweird.f32 %v1334
  %vm1341 = vmor %vm1339, %vm1340
  %v1342 = vsel %vm1341, %v1334, %v1338
  %v1343 = vand.u32 2147483647, %v1333
  %vm1344 = vcmp.eq.f32.partialorder %v1343, 8.507059e+37
  %v1345 = vand.u32 %v1333, 2147483648
  %v1346 = vor.u32 1.1754944e-38, %v1345
  %v1347 = vsel %vm1344, %v1346, %v1342
  %v1348 = vmul.f32 1.0, %v1347
  %v1349 = vtanh.pop %v1329
  %v1350 = vld [vmem:[#allocation5] sm:$0xff]
  %1352 = vrot.lane.b32.xlu0 %v1350, 32
  %v1353 = vpop.permute.xlu0 %1352
  %v1355 = vmul.f32 %v1348, %v1353
  %1357 = vrot.lane.b32.xlu0 %v1349, 32
  %v1358 = vpop.permute.xlu0 %1357
  %v1360 = vmul.f32 %v1348, %v1358
  %1362 = vrot.lane.b32.xlu0 %v1360, 32
  %v1363 = vpop.permute.xlu0 %1362
  %v1365 = vadd.f32 %v1355, %v1363
  %v1366 = vtanh.pop %v1365
  %1368 = vrot.lane.b32.xlu0 %v1366, 32
  %v1369 = vpop.permute.xlu0 %1368
  %v1371 = vmul.f32 %v1348, %v1369
  %1373 = vrot.lane.b32.xlu0 %v1371, 64
  %v1374 = vpop.permute.xlu0 %1373
  %1376 = vst.msk [vmem:[#allocation4] sm:$0xff] %vm23, %v1374
  %1378 = vrot.lane.b32.xlu0 %v1365, 96
  %v1379 = vpop.permute.xlu0 %1378
  %1381 = vst.msk [vmem:[#allocation5] sm:$0xff] %vm23, %v1379
  %v1382 = vld [vmem:[#allocation4] sm:$0xff]
  %s1383 = scalar_lea.vmem %s4, 8
  %1384 = vst.msk [vmem:[%s1383] sm:$0xff] %vm23, %v1382
  %v1385 = vld [vmem:[#allocation5] sm:$0xff]
  %s1386 = scalar_lea.vmem %s5, 8
  %1387 = vst.msk [vmem:[%s1386] sm:$0xff] %vm23, %v1385
  // Predicated region
  $region18: #{encoder_forward_pallas.1} parent=0 // pred_check
    _
  $region19: #{encoder_forward_pallas.1} parent=0 // pred_check_branch
    %1389 = sbr.rel (0) target = $region21
  $region20: #{encoder_forward_pallas.1} parent=0 // pred_region
    _
  $region21: #{encoder_forward_pallas.1} parent=0 // pred_fallthru
    _
  // Predicated region
  $region22: #{encoder_forward_pallas.1} parent=0 // pred_check
    _
  $region23: #{encoder_forward_pallas.1} parent=0 // pred_check_branch
    %1391 = sbr.rel (0) target = $region25
  $region24: #{encoder_forward_pallas.1} parent=0 // pred_region
    _
  $region25: #{encoder_forward_pallas.1} parent=0 // pred_fallthru
    _
  // Predicated region
  $region26: #{encoder_forward_pallas.1} parent=0 // pred_check
    _
  $region27: #{encoder_forward_pallas.1} parent=0 // pred_check_branch
    %1393 = sbr.rel (0) target = $region29
  $region28: #{encoder_forward_pallas.1} parent=0 // pred_region
    _
  $region29: #{encoder_forward_pallas.1} parent=0 // pred_fallthru
    _
  // Predicated region
  $region30: #{encoder_forward_pallas.1} parent=0 // pred_check
    _
  $region31: #{encoder_forward_pallas.1} parent=0 // pred_check_branch
    %1395 = sbr.rel (0) target = $region33
  $region32: #{encoder_forward_pallas.1} parent=0 // pred_region
    _
  $region33: #{encoder_forward_pallas.1} parent=0 // pred_fallthru
    _

</llo_original>
